<compile_context>
chip_gen: v7x
topology: tpu7x:2x2x1
jax: 0.10.0
libtpu: 0.0.40
codegen_flags: <defaults>
</compile_context>

<pallas_src>
import jax
import jax.numpy as jnp
from jax.experimental import pallas as pl
from jax.experimental.pallas import tpu as pltpu

EPS = 1e-5
_VMEM_LIMIT = 32 * 1024 * 1024       # explicit scoped-VMEM limit (safe on v5e/v6e/v7x)
_VMEM_BUDGET = 24 * 1024 * 1024      # tile-sizing budget (headroom under the limit)


def _pick_tile_cols(P, cin, K):
    """Largest position tile (multiple of 128) whose double-buffered f32 in+out columns fit
    the VMEM budget; full-dim for small inputs."""
    per_col = 8 * (cin + K)                                        # 2 bufs * 4 B * (in + out) rows
    cap = max(512, min(4096, (_VMEM_BUDGET // per_col) // 128 * 128))
    return P if P <= cap else cap


def _make_stats_kernel(total_cols, tile_cols):
    """Pass 1: y = ReLU(W @ x + b); accumulate per-row sum / sum-of-squares into s_ref (per image)."""
    need_mask = (total_cols % tile_cols) != 0

    def kernel(x_ref, w_ref, b_ref, s_ref):
        t = pl.program_id(1)

        @pl.when(t == 0)
        def _():
            s_ref[...] = jnp.zeros_like(s_ref)

        y = jnp.dot(w_ref[...], x_ref[...], preferred_element_type=jnp.float32)
        y = jnp.maximum(y + b_ref[...], 0.0)                       # conv bias + ReLU
        if need_mask:                                              # zero padded lanes of a partial tile
            col = t * tile_cols + jax.lax.broadcasted_iota(jnp.int32, y.shape, 1)
            y = jnp.where(col < total_cols, y, 0.0)
        s_ref[:, 0:1] = s_ref[:, 0:1] + jnp.sum(y, axis=1, keepdims=True)
        s_ref[:, 1:2] = s_ref[:, 1:2] + jnp.sum(y * y, axis=1, keepdims=True)

    return kernel


def _apply_kernel(x_ref, w_ref, b_ref, scale_ref, shift_ref, o_ref):
    """Pass 2: recompute conv + ReLU and apply folded BatchNorm scale/shift (lane-dense out)."""
    y = jnp.dot(w_ref[...], x_ref[...], preferred_element_type=jnp.float32)
    y = jnp.maximum(y + b_ref[...], 0.0)
    o_ref[...] = y * scale_ref[...] + shift_ref[...]


def _conv_relu_bn_branch(x3, w_mat, bias, gamma_c, beta_c, rep):
    """x3: (N, Cin, P) f32, w_mat: (K, Cin), bias: (K,), K = rep * C.
    Returns (N, K, P) = BatchNorm(ReLU(w @ x + b)) where the K rows fold into C channels
    in `rep` groups (transposed-conv sub-pixels)."""
    N, cin, P = x3.shape
    K = w_mat.shape[0]
    C = K // rep
    tcols = _pick_tile_cols(P, cin, K)
    T = pl.cdiv(P, tcols)

    x_spec = pl.BlockSpec((None, cin, tcols), lambda n, t: (n, 0, t))
    w_spec = pl.BlockSpec((K, cin), lambda n, t: (0, 0))
    vec_spec = pl.BlockSpec((K, 1), lambda n, t: (0, 0))

    b_col = bias.astype(jnp.float32)[:, None]                      # (K, 1)

    mm_flops = 2 * N * P * K * cin
    ew_flops = 4 * N * P * K

    # ---- pass 1: per-image, per-row sum / sum-of-squares of ReLU(conv) ----
    stats = pl.pallas_call(
        _make_stats_kernel(P, tcols),
        out_shape=jax.ShapeDtypeStruct((N, K, 2), jnp.float32),
        grid=(N, T),
        in_specs=[x_spec, w_spec, vec_spec],
        out_specs=pl.BlockSpec((None, K, 2), lambda n, t: (n, 0, 0)),
        compiler_params=pltpu.CompilerParams(
            dimension_semantics=("parallel", "arbitrary"),         # per-image accumulator -> megacore
            vmem_limit_bytes=_VMEM_LIMIT),
        cost_estimate=pl.CostEstimate(
            flops=mm_flops + ew_flops, transcendentals=0,
            bytes_accessed=4 * (N * cin * P + K * cin + 2 * K + N * K * 2)),
    )(x3, w_mat, b_col)

    # ---- fold group stats + BN affine into per-row scale/shift (tiny, in XLA) ----
    s = stats.sum(axis=0)                                          # (K, 2)
    count = float(N * P * rep)                                     # elements per BN channel
    s1 = s[:, 0].reshape(rep, C).sum(axis=0)
    s2 = s[:, 1].reshape(rep, C).sum(axis=0)
    mean = s1 / count
    var = jnp.maximum(s2 / count - mean * mean, 0.0)               # biased var (train-mode BN)
    inv_std = jax.lax.rsqrt(var + EPS)
    scale_c = inv_std * gamma_c
    shift_c = beta_c - mean * scale_c
    scale = jnp.tile(scale_c, rep)[:, None]                        # (K, 1)
    shift = jnp.tile(shift_c, rep)[:, None]

    # ---- pass 2: recompute conv and apply scale/shift ----
    out = pl.pallas_call(
        _apply_kernel,
        out_shape=jax.ShapeDtypeStruct((N, K, P), jnp.float32),
        grid=(N, T),
        in_specs=[x_spec, w_spec, vec_spec, vec_spec, vec_spec],
        out_specs=pl.BlockSpec((None, K, tcols), lambda n, t: (n, 0, t)),
        compiler_params=pltpu.CompilerParams(
            dimension_semantics=("parallel", "parallel"),
            vmem_limit_bytes=_VMEM_LIMIT),
        cost_estimate=pl.CostEstimate(
            flops=mm_flops + ew_flops, transcendentals=0,
            bytes_accessed=4 * (N * cin * P + K * cin + 3 * K + N * K * P)),
    )(x3, w_mat, b_col, scale, shift)
    return out


def unet_block_forward(up_p, x_p, params):
    """up_p: (N, up_in, H, W); x_p: (N, x_in, 2H, 2W) -> (N, n_out, 2H, 2W)  (NCHW)."""
    N, cup, H, W = up_p.shape
    Nx, cx, H2, W2 = x_p.shape
    wt, bt = params["wt"], params["bt"]          # ConvTranspose2d: (up_in, up_out, 2, 2), (up_out,)
    wx, bx = params["wx"], params["bx"]          # Conv2d 1x1:      (x_out, x_in, 1, 1),  (x_out,)
    gamma, beta = params["gamma"], params["beta"]
    up_out = wt.shape[1]
    x_out = wx.shape[0]

    # ---- transposed-conv branch: 2x2 stride-2 deconv == 4 stacked 1x1 convs ----
    u3 = up_p.reshape(N, cup, H * W)                               # free reshape (NCHW -> channel-major)
    w_up = wt.transpose(2, 3, 1, 0).reshape(4 * up_out, cup)       # rows ordered (di, dj, oc)
    b_up = jnp.tile(bt, 4)
    up_flat = _conv_relu_bn_branch(u3, w_up, b_up, gamma[:up_out], beta[:up_out], rep=4)
    # depth-to-space: (N, (di,dj,oc), H*W) -> (N, oc, 2H, 2W)
    up_nchw = (up_flat.reshape(N, 2, 2, up_out, H, W)
               .transpose(0, 3, 4, 1, 5, 2)
               .reshape(N, up_out, 2 * H, 2 * W))

    # ---- 1x1 conv branch ----
    x3 = x_p.reshape(Nx, cx, H2 * W2)                              # free reshape
    w_x = wx.reshape(x_out, cx)
    x_flat = _conv_relu_bn_branch(x3, w_x, bx, gamma[up_out:], beta[up_out:], rep=1)
    x_nchw = x_flat.reshape(Nx, x_out, H2, W2)                     # free reshape (already NCHW)

    # TODO(synk): the depth-to-space transpose and this channel concat are the two remaining
    # XLA layout passes; folding them into the kernels needs strided out_specs / in-kernel
    # lane interleave which is not cleanly expressible today.
    return jnp.concatenate([up_nchw, x_nchw], axis=1)


def reference_forward(up_p, x_p, params, eps=EPS):
    """Pure-JAX reference mirroring the PyTorch module (train-mode BatchNorm)."""
    wt, bt = params["wt"], params["bt"]
    wx, bx = params["wx"], params["bx"]
    gamma, beta = params["gamma"], params["beta"]
    N, _, H, W = up_p.shape
    up_out = wt.shape[1]
    x_out = wx.shape[0]

    t = jnp.einsum("nchw,cokl->noklhw", up_p, wt, precision="highest")
    up = jnp.zeros((N, up_out, 2 * H, 2 * W), jnp.float32)
    for di in range(2):
        for dj in range(2):
            up = up.at[:, :, di::2, dj::2].set(t[:, :, di, dj])
    up = up + bt[None, :, None, None]

    xo = jnp.einsum("nchw,oc->nohw", x_p, wx.reshape(x_out, -1), precision="highest")
    xo = xo + bx[None, :, None, None]

    cat = jnp.concatenate([up, xo], axis=1)
    r = jnp.maximum(cat, 0.0)
    mean = r.mean(axis=(0, 2, 3), keepdims=True)
    var = ((r - mean) ** 2).mean(axis=(0, 2, 3), keepdims=True)
    return (r - mean) / jnp.sqrt(var + eps) * gamma[None, :, None, None] + beta[
        None, :, None, None
    ]


if __name__ == "__main__":
    key = jax.random.PRNGKey(0)
    ks = jax.random.split(key, 8)

    # UnetBlock(up_in=4, x_in=6, n_out=8); up_out = x_out = 4
    N, up_in, x_in, n_out = 2, 4, 6, 8
    H = W = 8
    up_out = x_out = n_out // 2

    up_p = jax.random.normal(ks[0], (N, up_in, H, W), jnp.float32)
    x_p = jax.random.normal(ks[1], (N, x_in, 2 * H, 2 * W), jnp.float32)

    params = dict(
        wt=0.3 * jax.random.normal(ks[2], (up_in, up_out, 2, 2), jnp.float32),
        bt=0.1 * jax.random.normal(ks[3], (up_out,), jnp.float32),
        wx=0.3 * jax.random.normal(ks[4], (x_out, x_in, 1, 1), jnp.float32),
        bx=0.1 * jax.random.normal(ks[5], (x_out,), jnp.float32),
        gamma=1.0 + 0.1 * jax.random.normal(ks[6], (n_out,), jnp.float32),
        beta=0.1 * jax.random.normal(ks[7], (n_out,), jnp.float32),
    )

    fwd = jax.jit(unet_block_forward)
    out = jax.block_until_ready(fwd(up_p, x_p, params))
    assert out.shape == (N, n_out, 2 * H, 2 * W), out.shape

    ref = reference_forward(up_p, x_p, params)
    err = float(jnp.max(jnp.abs(out - ref)))
    assert err < 2e-2, f"max abs err {err}"

    print("KERNEL_OK")
</pallas_src>

<mosaic_0001>
module attributes {stable_mosaic.version = 11 : i64} {
  func.func @kernel(%arg0: i32, %arg1: i32, %arg2: memref<1x6x256xf32, #tpu.memory_space<vmem>>, %arg3: memref<4x6xf32, #tpu.memory_space<vmem>>, %arg4: memref<4x1xf32, #tpu.memory_space<vmem>>, %arg5: memref<1x4x2xf32, #tpu.memory_space<vmem>>) attributes {dimension_semantics = [#tpu.dimension_semantics<parallel>, #tpu.dimension_semantics<arbitrary>], iteration_bounds = array<i64: 2, 1>, scalar_prefetch = 0 : i64, scratch_operands = 0 : i64, tpu.core_type = #tpu.core_type<tc>, window_params = [{transform_indices = @transform_0, window_bounds = array<i64: 1, 6, 256>}, {pipeline_mode = #tpu.pipeline_mode<synchronous>, transform_indices = @transform_1, window_bounds = array<i64: 4, 6>}, {pipeline_mode = #tpu.pipeline_mode<synchronous>, transform_indices = @transform_2, window_bounds = array<i64: 4, 1>}, {transform_indices = @transform_3, window_bounds = array<i64: 1, 4, 2>}]} {
    %c0_i32 = arith.constant 0 : i32
    %0 = arith.cmpi eq, %arg1, %c0_i32 : i32
    %1 = arith.extui %0 : i1 to i32
    %c0_i32_0 = arith.constant 0 : i32
    %2 = arith.cmpi ne, %1, %c0_i32_0 : i32
    scf.if %2 {
      %cst_21 = arith.constant 0.000000e+00 : f32
      %29 = vector.broadcast %cst_21 : f32 to vector<4x2xf32>
      %c0_22 = arith.constant 0 : index
      %c0_23 = arith.constant 0 : index
      %c0_24 = arith.constant 0 : index
      %30 = vector.load %arg5[%c0_22, %c0_23, %c0_24] : memref<1x4x2xf32, #tpu.memory_space<vmem>>, vector<1x4x2xf32>
      %31 = vector.shape_cast %30 : vector<1x4x2xf32> to vector<4x2xf32>
      %32 = vector.shape_cast %29 : vector<4x2xf32> to vector<1x4x2xf32>
      tpu.vector_store %arg5[%c0_22, %c0_23, %c0_24], %32 {strides = array<i32>} : memref<1x4x2xf32, #tpu.memory_space<vmem>>, vector<1x4x2xf32>,
    } else {
    }
    %c0 = arith.constant 0 : index
    %c0_1 = arith.constant 0 : index
    %3 = vector.load %arg3[%c0, %c0_1] : memref<4x6xf32, #tpu.memory_space<vmem>>, vector<4x6xf32>
    %c0_2 = arith.constant 0 : index
    %c0_3 = arith.constant 0 : index
    %c0_4 = arith.constant 0 : index
    %4 = vector.load %arg2[%c0_2, %c0_3, %c0_4] : memref<1x6x256xf32, #tpu.memory_space<vmem>>, vector<1x6x256xf32>
    %5 = vector.shape_cast %4 : vector<1x6x256xf32> to vector<6x256xf32>
    %cst = arith.constant dense<0.000000e+00> : vector<4x256xf32>
    %6 = tpu.matmul %3, %5, %cst {dimension_numbers = #tpu.dot_dimension_numbers<[1], [0], [0], [1], [0, 0, 1, 1], [], []>} : vector<4x6xf32>, vector<6x256xf32>, vector<4x256xf32> -> vector<4x256xf32>
    %c0_5 = arith.constant 0 : index
    %c0_6 = arith.constant 0 : index
    %7 = vector.load %arg4[%c0_5, %c0_6] : memref<4x1xf32, #tpu.memory_space<vmem>>, vector<4x1xf32>
    %8 = vector.broadcast %7 : vector<4x1xf32> to vector<4x256xf32>
    %9 = arith.addf %6, %8 : vector<4x256xf32>
    %cst_7 = arith.constant 0.000000e+00 : f32
    %10 = vector.broadcast %cst_7 : f32 to vector<4x256xf32>
    %11 = arith.maximumf %9, %10 : vector<4x256xf32>
    %c0_8 = arith.constant 0 : index
    %c0_9 = arith.constant 0 : index
    %c0_10 = arith.constant 0 : index
    %12 = vector.load %arg5[%c0_8, %c0_9, %c0_10] : memref<1x4x2xf32, #tpu.memory_space<vmem>>, vector<1x4x1xf32>
    %13 = vector.shape_cast %12 : vector<1x4x1xf32> to vector<4x1xf32>
    %cst_11 = arith.constant dense<0.000000e+00> : vector<4xf32>
    %14 = vector.multi_reduction <add>, %11, %cst_11 [1] : vector<4x256xf32> to vector<4xf32>
    %15 = vector.shape_cast %14 : vector<4xf32> to vector<4x1xf32>
    %16 = arith.addf %13, %15 : vector<4x1xf32>
    %c0_12 = arith.constant 0 : index
    %c0_13 = arith.constant 0 : index
    %c0_14 = arith.constant 0 : index
    %17 = vector.load %arg5[%c0_12, %c0_13, %c0_14] : memref<1x4x2xf32, #tpu.memory_space<vmem>>, vector<1x4x1xf32>
    %18 = vector.shape_cast %17 : vector<1x4x1xf32> to vector<4x1xf32>
    %19 = vector.shape_cast %16 : vector<4x1xf32> to vector<1x4x1xf32>
    tpu.vector_store %arg5[%c0_12, %c0_13, %c0_14], %19 {strides = array<i32>} : memref<1x4x2xf32, #tpu.memory_space<vmem>>, vector<1x4x1xf32>,
    %c0_15 = arith.constant 0 : index
    %c0_16 = arith.constant 0 : index
    %c1 = arith.constant 1 : index
    %20 = vector.load %arg5[%c0_15, %c0_16, %c1] : memref<1x4x2xf32, #tpu.memory_space<vmem>>, vector<1x4x1xf32>
    %21 = vector.shape_cast %20 : vector<1x4x1xf32> to vector<4x1xf32>
    %22 = arith.mulf %11, %11 : vector<4x256xf32>
    %cst_17 = arith.constant dense<0.000000e+00> : vector<4xf32>
    %23 = vector.multi_reduction <add>, %22, %cst_17 [1] : vector<4x256xf32> to vector<4xf32>
    %24 = vector.shape_cast %23 : vector<4xf32> to vector<4x1xf32>
    %25 = arith.addf %21, %24 : vector<4x1xf32>
    %c0_18 = arith.constant 0 : index
    %c0_19 = arith.constant 0 : index
    %c1_20 = arith.constant 1 : index
    %26 = vector.load %arg5[%c0_18, %c0_19, %c1_20] : memref<1x4x2xf32, #tpu.memory_space<vmem>>, vector<1x4x1xf32>
    %27 = vector.shape_cast %26 : vector<1x4x1xf32> to vector<4x1xf32>
    %28 = vector.shape_cast %25 : vector<4x1xf32> to vector<1x4x1xf32>
    tpu.vector_store %arg5[%c0_18, %c0_19, %c1_20], %28 {strides = array<i32>} : memref<1x4x2xf32, #tpu.memory_space<vmem>>, vector<1x4x1xf32>,
    return
  }
  func.func @transform_0(%arg0: i32, %arg1: i32) -> (i32, i32, i32) {
    %c0_i32 = arith.constant 0 : i32
    %c0_i32_0 = arith.constant 0 : i32
    return %arg0, %c0_i32, %arg1 : i32, i32, i32
  }
  func.func @transform_1(%arg0: i32, %arg1: i32) -> (i32, i32) {
    %c0_i32 = arith.constant 0 : i32
    %c0_i32_0 = arith.constant 0 : i32
    %c0_i32_1 = arith.constant 0 : i32
    return %c0_i32, %c0_i32_0 : i32, i32
  }
  func.func @transform_2(%arg0: i32, %arg1: i32) -> (i32, i32) {
    %c0_i32 = arith.constant 0 : i32
    %c0_i32_0 = arith.constant 0 : i32
    %c0_i32_1 = arith.constant 0 : i32
    return %c0_i32, %c0_i32_0 : i32, i32
  }
  func.func @transform_3(%arg0: i32, %arg1: i32) -> (i32, i32, i32) {
    %c0_i32 = arith.constant 0 : i32
    %c0_i32_0 = arith.constant 0 : i32
    %c0_i32_1 = arith.constant 0 : i32
    return %arg0, %c0_i32, %c0_i32_0 : i32, i32, i32
  }
}

module attributes {stable_mosaic.version = 11 : i64} {
  func.func @kernel(%arg0: i32, %arg1: i32, %arg2: memref<1x4x64xf32, #tpu.memory_space<vmem>>, %arg3: memref<16x4xf32, #tpu.memory_space<vmem>>, %arg4: memref<16x1xf32, #tpu.memory_space<vmem>>, %arg5: memref<1x16x2xf32, #tpu.memory_space<vmem>>) attributes {dimension_semantics = [#tpu.dimension_semantics<parallel>, #tpu.dimension_semantics<arbitrary>], iteration_bounds = array<i64: 2, 1>, scalar_prefetch = 0 : i64, scratch_operands = 0 : i64, tpu.core_type = #tpu.core_type<tc>, window_params = [{transform_indices = @transform_0, window_bounds = array<i64: 1, 4, 64>}, {pipeline_mode = #tpu.pipeline_mode<synchronous>, transform_indices = @transform_1, window_bounds = array<i64: 16, 4>}, {pipeline_mode = #tpu.pipeline_mode<synchronous>, transform_indices = @transform_2, window_bounds = array<i64: 16, 1>}, {transform_indices = @transform_3, window_bounds = array<i64: 1, 16, 2>}]} {
    %c0_i32 = arith.constant 0 : i32
    %0 = arith.cmpi eq, %arg1, %c0_i32 : i32
    %1 = arith.extui %0 : i1 to i32
    %c0_i32_0 = arith.constant 0 : i32
    %2 = arith.cmpi ne, %1, %c0_i32_0 : i32
    scf.if %2 {
      %cst_21 = arith.constant 0.000000e+00 : f32
      %29 = vector.broadcast %cst_21 : f32 to vector<16x2xf32>
      %c0_22 = arith.constant 0 : index
      %c0_23 = arith.constant 0 : index
      %c0_24 = arith.constant 0 : index
      %30 = vector.load %arg5[%c0_22, %c0_23, %c0_24] : memref<1x16x2xf32, #tpu.memory_space<vmem>>, vector<1x16x2xf32>
      %31 = vector.shape_cast %30 : vector<1x16x2xf32> to vector<16x2xf32>
      %32 = vector.shape_cast %29 : vector<16x2xf32> to vector<1x16x2xf32>
      tpu.vector_store %arg5[%c0_22, %c0_23, %c0_24], %32 {strides = array<i32>} : memref<1x16x2xf32, #tpu.memory_space<vmem>>, vector<1x16x2xf32>,
    } else {
    }
    %c0 = arith.constant 0 : index
    %c0_1 = arith.constant 0 : index
    %3 = vector.load %arg3[%c0, %c0_1] : memref<16x4xf32, #tpu.memory_space<vmem>>, vector<16x4xf32>
    %c0_2 = arith.constant 0 : index
    %c0_3 = arith.constant 0 : index
    %c0_4 = arith.constant 0 : index
    %4 = vector.load %arg2[%c0_2, %c0_3, %c0_4] : memref<1x4x64xf32, #tpu.memory_space<vmem>>, vector<1x4x64xf32>
    %5 = vector.shape_cast %4 : vector<1x4x64xf32> to vector<4x64xf32>
    %cst = arith.constant dense<0.000000e+00> : vector<16x64xf32>
    %6 = tpu.matmul %3, %5, %cst {dimension_numbers = #tpu.dot_dimension_numbers<[1], [0], [0], [1], [0, 0, 1, 1], [], []>} : vector<16x4xf32>, vector<4x64xf32>, vector<16x64xf32> -> vector<16x64xf32>
    %c0_5 = arith.constant 0 : index
    %c0_6 = arith.constant 0 : index
    %7 = vector.load %arg4[%c0_5, %c0_6] : memref<16x1xf32, #tpu.memory_space<vmem>>, vector<16x1xf32>
    %8 = vector.broadcast %7 : vector<16x1xf32> to vector<16x64xf32>
    %9 = arith.addf %6, %8 : vector<16x64xf32>
    %cst_7 = arith.constant 0.000000e+00 : f32
    %10 = vector.broadcast %cst_7 : f32 to vector<16x64xf32>
    %11 = arith.maximumf %9, %10 : vector<16x64xf32>
    %c0_8 = arith.constant 0 : index
    %c0_9 = arith.constant 0 : index
    %c0_10 = arith.constant 0 : index
    %12 = vector.load %arg5[%c0_8, %c0_9, %c0_10] : memref<1x16x2xf32, #tpu.memory_space<vmem>>, vector<1x16x1xf32>
    %13 = vector.shape_cast %12 : vector<1x16x1xf32> to vector<16x1xf32>
    %cst_11 = arith.constant dense<0.000000e+00> : vector<16xf32>
    %14 = vector.multi_reduction <add>, %11, %cst_11 [1] : vector<16x64xf32> to vector<16xf32>
    %15 = vector.shape_cast %14 : vector<16xf32> to vector<16x1xf32>
    %16 = arith.addf %13, %15 : vector<16x1xf32>
    %c0_12 = arith.constant 0 : index
    %c0_13 = arith.constant 0 : index
    %c0_14 = arith.constant 0 : index
    %17 = vector.load %arg5[%c0_12, %c0_13, %c0_14] : memref<1x16x2xf32, #tpu.memory_space<vmem>>, vector<1x16x1xf32>
    %18 = vector.shape_cast %17 : vector<1x16x1xf32> to vector<16x1xf32>
    %19 = vector.shape_cast %16 : vector<16x1xf32> to vector<1x16x1xf32>
    tpu.vector_store %arg5[%c0_12, %c0_13, %c0_14], %19 {strides = array<i32>} : memref<1x16x2xf32, #tpu.memory_space<vmem>>, vector<1x16x1xf32>,
    %c0_15 = arith.constant 0 : index
    %c0_16 = arith.constant 0 : index
    %c1 = arith.constant 1 : index
    %20 = vector.load %arg5[%c0_15, %c0_16, %c1] : memref<1x16x2xf32, #tpu.memory_space<vmem>>, vector<1x16x1xf32>
    %21 = vector.shape_cast %20 : vector<1x16x1xf32> to vector<16x1xf32>
    %22 = arith.mulf %11, %11 : vector<16x64xf32>
    %cst_17 = arith.constant dense<0.000000e+00> : vector<16xf32>
    %23 = vector.multi_reduction <add>, %22, %cst_17 [1] : vector<16x64xf32> to vector<16xf32>
    %24 = vector.shape_cast %23 : vector<16xf32> to vector<16x1xf32>
    %25 = arith.addf %21, %24 : vector<16x1xf32>
    %c0_18 = arith.constant 0 : index
    %c0_19 = arith.constant 0 : index
    %c1_20 = arith.constant 1 : index
    %26 = vector.load %arg5[%c0_18, %c0_19, %c1_20] : memref<1x16x2xf32, #tpu.memory_space<vmem>>, vector<1x16x1xf32>
    %27 = vector.shape_cast %26 : vector<1x16x1xf32> to vector<16x1xf32>
    %28 = vector.shape_cast %25 : vector<16x1xf32> to vector<1x16x1xf32>
    tpu.vector_store %arg5[%c0_18, %c0_19, %c1_20], %28 {strides = array<i32>} : memref<1x16x2xf32, #tpu.memory_space<vmem>>, vector<1x16x1xf32>,
    return
  }
  func.func @transform_0(%arg0: i32, %arg1: i32) -> (i32, i32, i32) {
    %c0_i32 = arith.constant 0 : i32
    %c0_i32_0 = arith.constant 0 : i32
    return %arg0, %c0_i32, %arg1 : i32, i32, i32
  }
  func.func @transform_1(%arg0: i32, %arg1: i32) -> (i32, i32) {
    %c0_i32 = arith.constant 0 : i32
    %c0_i32_0 = arith.constant 0 : i32
    %c0_i32_1 = arith.constant 0 : i32
    return %c0_i32, %c0_i32_0 : i32, i32
  }
  func.func @transform_2(%arg0: i32, %arg1: i32) -> (i32, i32) {
    %c0_i32 = arith.constant 0 : i32
    %c0_i32_0 = arith.constant 0 : i32
    %c0_i32_1 = arith.constant 0 : i32
    return %c0_i32, %c0_i32_0 : i32, i32
  }
  func.func @transform_3(%arg0: i32, %arg1: i32) -> (i32, i32, i32) {
    %c0_i32 = arith.constant 0 : i32
    %c0_i32_0 = arith.constant 0 : i32
    %c0_i32_1 = arith.constant 0 : i32
    return %arg0, %c0_i32, %c0_i32_0 : i32, i32, i32
  }
}

module attributes {stable_mosaic.version = 11 : i64} {
  func.func @_apply_kernel(%arg0: i32, %arg1: i32, %arg2: memref<1x6x256xf32, #tpu.memory_space<vmem>>, %arg3: memref<4x6xf32, #tpu.memory_space<vmem>>, %arg4: memref<4x1xf32, #tpu.memory_space<vmem>>, %arg5: memref<4x1xf32, #tpu.memory_space<vmem>>, %arg6: memref<4x1xf32, #tpu.memory_space<vmem>>, %arg7: memref<1x4x256xf32, #tpu.memory_space<vmem>>) attributes {dimension_semantics = [#tpu.dimension_semantics<parallel>, #tpu.dimension_semantics<parallel>], iteration_bounds = array<i64: 2, 1>, scalar_prefetch = 0 : i64, scratch_operands = 0 : i64, tpu.core_type = #tpu.core_type<tc>, window_params = [{transform_indices = @transform_0, window_bounds = array<i64: 1, 6, 256>}, {pipeline_mode = #tpu.pipeline_mode<synchronous>, transform_indices = @transform_1, window_bounds = array<i64: 4, 6>}, {pipeline_mode = #tpu.pipeline_mode<synchronous>, transform_indices = @transform_2, window_bounds = array<i64: 4, 1>}, {pipeline_mode = #tpu.pipeline_mode<synchronous>, transform_indices = @transform_3, window_bounds = array<i64: 4, 1>}, {pipeline_mode = #tpu.pipeline_mode<synchronous>, transform_indices = @transform_4, window_bounds = array<i64: 4, 1>}, {transform_indices = @transform_5, window_bounds = array<i64: 1, 4, 256>}]} {
    %c0 = arith.constant 0 : index
    %c0_0 = arith.constant 0 : index
    %0 = vector.load %arg3[%c0, %c0_0] : memref<4x6xf32, #tpu.memory_space<vmem>>, vector<4x6xf32>
    %c0_1 = arith.constant 0 : index
    %c0_2 = arith.constant 0 : index
    %c0_3 = arith.constant 0 : index
    %1 = vector.load %arg2[%c0_1, %c0_2, %c0_3] : memref<1x6x256xf32, #tpu.memory_space<vmem>>, vector<1x6x256xf32>
    %2 = vector.shape_cast %1 : vector<1x6x256xf32> to vector<6x256xf32>
    %cst = arith.constant dense<0.000000e+00> : vector<4x256xf32>
    %3 = tpu.matmul %0, %2, %cst {dimension_numbers = #tpu.dot_dimension_numbers<[1], [0], [0], [1], [0, 0, 1, 1], [], []>} : vector<4x6xf32>, vector<6x256xf32>, vector<4x256xf32> -> vector<4x256xf32>
    %c0_4 = arith.constant 0 : index
    %c0_5 = arith.constant 0 : index
    %4 = vector.load %arg4[%c0_4, %c0_5] : memref<4x1xf32, #tpu.memory_space<vmem>>, vector<4x1xf32>
    %5 = vector.broadcast %4 : vector<4x1xf32> to vector<4x256xf32>
    %6 = arith.addf %3, %5 : vector<4x256xf32>
    %cst_6 = arith.constant 0.000000e+00 : f32
    %7 = vector.broadcast %cst_6 : f32 to vector<4x256xf32>
    %8 = arith.maximumf %6, %7 : vector<4x256xf32>
    %c0_7 = arith.constant 0 : index
    %c0_8 = arith.constant 0 : index
    %9 = vector.load %arg5[%c0_7, %c0_8] : memref<4x1xf32, #tpu.memory_space<vmem>>, vector<4x1xf32>
    %10 = vector.broadcast %9 : vector<4x1xf32> to vector<4x256xf32>
    %11 = arith.mulf %8, %10 : vector<4x256xf32>
    %c0_9 = arith.constant 0 : index
    %c0_10 = arith.constant 0 : index
    %12 = vector.load %arg6[%c0_9, %c0_10] : memref<4x1xf32, #tpu.memory_space<vmem>>, vector<4x1xf32>
    %13 = vector.broadcast %12 : vector<4x1xf32> to vector<4x256xf32>
    %14 = arith.addf %11, %13 : vector<4x256xf32>
    %c0_11 = arith.constant 0 : index
    %c0_12 = arith.constant 0 : index
    %c0_13 = arith.constant 0 : index
    %15 = vector.load %arg7[%c0_11, %c0_12, %c0_13] : memref<1x4x256xf32, #tpu.memory_space<vmem>>, vector<1x4x256xf32>
    %16 = vector.shape_cast %15 : vector<1x4x256xf32> to vector<4x256xf32>
    %17 = vector.shape_cast %14 : vector<4x256xf32> to vector<1x4x256xf32>
    tpu.vector_store %arg7[%c0_11, %c0_12, %c0_13], %17 {strides = array<i32>} : memref<1x4x256xf32, #tpu.memory_space<vmem>>, vector<1x4x256xf32>,
    return
  }
  func.func @transform_0(%arg0: i32, %arg1: i32) -> (i32, i32, i32) {
    %c0_i32 = arith.constant 0 : i32
    %c0_i32_0 = arith.constant 0 : i32
    return %arg0, %c0_i32, %arg1 : i32, i32, i32
  }
  func.func @transform_1(%arg0: i32, %arg1: i32) -> (i32, i32) {
    %c0_i32 = arith.constant 0 : i32
    %c0_i32_0 = arith.constant 0 : i32
    %c0_i32_1 = arith.constant 0 : i32
    return %c0_i32, %c0_i32_0 : i32, i32
  }
  func.func @transform_2(%arg0: i32, %arg1: i32) -> (i32, i32) {
    %c0_i32 = arith.constant 0 : i32
    %c0_i32_0 = arith.constant 0 : i32
    %c0_i32_1 = arith.constant 0 : i32
    return %c0_i32, %c0_i32_0 : i32, i32
  }
  func.func @transform_3(%arg0: i32, %arg1: i32) -> (i32, i32) {
    %c0_i32 = arith.constant 0 : i32
    %c0_i32_0 = arith.constant 0 : i32
    %c0_i32_1 = arith.constant 0 : i32
    return %c0_i32, %c0_i32_0 : i32, i32
  }
  func.func @transform_4(%arg0: i32, %arg1: i32) -> (i32, i32) {
    %c0_i32 = arith.constant 0 : i32
    %c0_i32_0 = arith.constant 0 : i32
    %c0_i32_1 = arith.constant 0 : i32
    return %c0_i32, %c0_i32_0 : i32, i32
  }
  func.func @transform_5(%arg0: i32, %arg1: i32) -> (i32, i32, i32) {
    %c0_i32 = arith.constant 0 : i32
    %c0_i32_0 = arith.constant 0 : i32
    return %arg0, %c0_i32, %arg1 : i32, i32, i32
  }
}

module attributes {stable_mosaic.version = 11 : i64} {
  func.func @_apply_kernel(%arg0: i32, %arg1: i32, %arg2: memref<1x4x64xf32, #tpu.memory_space<vmem>>, %arg3: memref<16x4xf32, #tpu.memory_space<vmem>>, %arg4: memref<16x1xf32, #tpu.memory_space<vmem>>, %arg5: memref<16x1xf32, #tpu.memory_space<vmem>>, %arg6: memref<16x1xf32, #tpu.memory_space<vmem>>, %arg7: memref<1x16x64xf32, #tpu.memory_space<vmem>>) attributes {dimension_semantics = [#tpu.dimension_semantics<parallel>, #tpu.dimension_semantics<parallel>], iteration_bounds = array<i64: 2, 1>, scalar_prefetch = 0 : i64, scratch_operands = 0 : i64, tpu.core_type = #tpu.core_type<tc>, window_params = [{transform_indices = @transform_0, window_bounds = array<i64: 1, 4, 64>}, {pipeline_mode = #tpu.pipeline_mode<synchronous>, transform_indices = @transform_1, window_bounds = array<i64: 16, 4>}, {pipeline_mode = #tpu.pipeline_mode<synchronous>, transform_indices = @transform_2, window_bounds = array<i64: 16, 1>}, {pipeline_mode = #tpu.pipeline_mode<synchronous>, transform_indices = @transform_3, window_bounds = array<i64: 16, 1>}, {pipeline_mode = #tpu.pipeline_mode<synchronous>, transform_indices = @transform_4, window_bounds = array<i64: 16, 1>}, {transform_indices = @transform_5, window_bounds = array<i64: 1, 16, 64>}]} {
    %c0 = arith.constant 0 : index
    %c0_0 = arith.constant 0 : index
    %0 = vector.load %arg3[%c0, %c0_0] : memref<16x4xf32, #tpu.memory_space<vmem>>, vector<16x4xf32>
    %c0_1 = arith.constant 0 : index
    %c0_2 = arith.constant 0 : index
    %c0_3 = arith.constant 0 : index
    %1 = vector.load %arg2[%c0_1, %c0_2, %c0_3] : memref<1x4x64xf32, #tpu.memory_space<vmem>>, vector<1x4x64xf32>
    %2 = vector.shape_cast %1 : vector<1x4x64xf32> to vector<4x64xf32>
    %cst = arith.constant dense<0.000000e+00> : vector<16x64xf32>
    %3 = tpu.matmul %0, %2, %cst {dimension_numbers = #tpu.dot_dimension_numbers<[1], [0], [0], [1], [0, 0, 1, 1], [], []>} : vector<16x4xf32>, vector<4x64xf32>, vector<16x64xf32> -> vector<16x64xf32>
    %c0_4 = arith.constant 0 : index
    %c0_5 = arith.constant 0 : index
    %4 = vector.load %arg4[%c0_4, %c0_5] : memref<16x1xf32, #tpu.memory_space<vmem>>, vector<16x1xf32>
    %5 = vector.broadcast %4 : vector<16x1xf32> to vector<16x64xf32>
    %6 = arith.addf %3, %5 : vector<16x64xf32>
    %cst_6 = arith.constant 0.000000e+00 : f32
    %7 = vector.broadcast %cst_6 : f32 to vector<16x64xf32>
    %8 = arith.maximumf %6, %7 : vector<16x64xf32>
    %c0_7 = arith.constant 0 : index
    %c0_8 = arith.constant 0 : index
    %9 = vector.load %arg5[%c0_7, %c0_8] : memref<16x1xf32, #tpu.memory_space<vmem>>, vector<16x1xf32>
    %10 = vector.broadcast %9 : vector<16x1xf32> to vector<16x64xf32>
    %11 = arith.mulf %8, %10 : vector<16x64xf32>
    %c0_9 = arith.constant 0 : index
    %c0_10 = arith.constant 0 : index
    %12 = vector.load %arg6[%c0_9, %c0_10] : memref<16x1xf32, #tpu.memory_space<vmem>>, vector<16x1xf32>
    %13 = vector.broadcast %12 : vector<16x1xf32> to vector<16x64xf32>
    %14 = arith.addf %11, %13 : vector<16x64xf32>
    %c0_11 = arith.constant 0 : index
    %c0_12 = arith.constant 0 : index
    %c0_13 = arith.constant 0 : index
    %15 = vector.load %arg7[%c0_11, %c0_12, %c0_13] : memref<1x16x64xf32, #tpu.memory_space<vmem>>, vector<1x16x64xf32>
    %16 = vector.shape_cast %15 : vector<1x16x64xf32> to vector<16x64xf32>
    %17 = vector.shape_cast %14 : vector<16x64xf32> to vector<1x16x64xf32>
    tpu.vector_store %arg7[%c0_11, %c0_12, %c0_13], %17 {strides = array<i32>} : memref<1x16x64xf32, #tpu.memory_space<vmem>>, vector<1x16x64xf32>,
    return
  }
  func.func @transform_0(%arg0: i32, %arg1: i32) -> (i32, i32, i32) {
    %c0_i32 = arith.constant 0 : i32
    %c0_i32_0 = arith.constant 0 : i32
    return %arg0, %c0_i32, %arg1 : i32, i32, i32
  }
  func.func @transform_1(%arg0: i32, %arg1: i32) -> (i32, i32) {
    %c0_i32 = arith.constant 0 : i32
    %c0_i32_0 = arith.constant 0 : i32
    %c0_i32_1 = arith.constant 0 : i32
    return %c0_i32, %c0_i32_0 : i32, i32
  }
  func.func @transform_2(%arg0: i32, %arg1: i32) -> (i32, i32) {
    %c0_i32 = arith.constant 0 : i32
    %c0_i32_0 = arith.constant 0 : i32
    %c0_i32_1 = arith.constant 0 : i32
    return %c0_i32, %c0_i32_0 : i32, i32
  }
  func.func @transform_3(%arg0: i32, %arg1: i32) -> (i32, i32) {
    %c0_i32 = arith.constant 0 : i32
    %c0_i32_0 = arith.constant 0 : i32
    %c0_i32_1 = arith.constant 0 : i32
    return %c0_i32, %c0_i32_0 : i32, i32
  }
  func.func @transform_4(%arg0: i32, %arg1: i32) -> (i32, i32) {
    %c0_i32 = arith.constant 0 : i32
    %c0_i32_0 = arith.constant 0 : i32
    %c0_i32_1 = arith.constant 0 : i32
    return %c0_i32, %c0_i32_0 : i32, i32
  }
  func.func @transform_5(%arg0: i32, %arg1: i32) -> (i32, i32, i32) {
    %c0_i32 = arith.constant 0 : i32
    %c0_i32_0 = arith.constant 0 : i32
    return %arg0, %c0_i32, %arg1 : i32, i32, i32
  }
}

</mosaic_0001>

<llo_original>
// kernel: tile.20
$region0: #{tile.20}
  #allocation0 [shape = 's32[1]{0}', space=sflag, size = 0x4, scoped, tag = 'scoped memory for tile.20']
  %s0 = inlined_call_operand.vmem [shape: f32[4], index: 0, kind: input, shape index: {}]
  %s1 = inlined_call_operand.vmem [shape: f32[4,4], index: 1, kind: output, shape index: {}]
  // Predicated region
  $region2: #{tile.20} parent=0 // pred_check
    _
  $region3: #{tile.20} parent=0 // pred_check_branch
    %3 = sbr.rel (0) target = $region5
  $region4: #{tile.20} parent=0 // pred_region
    _
  $region5: #{tile.20} parent=0 // pred_fallthru
    _
  %v4 = vld [vmem:[%s0] ss:$0 sm:$0xff]
  %5 = vst [vmem:[%s1] sm:$0xf] %v4

// kernel: tile.0
$region0: #{tile.0}
  %s0 = inlined_call_operand.vmem [shape: f32[4,4], index: 0, kind: input, shape index: {}]
  %s1 = inlined_call_operand.vmem [shape: f32[16,1], index: 1, kind: output, shape index: {}]
  $region1: #{tile.0} parent=0
    #allocation0 [shape = 'u8[4096]{0}', space=vmem, size = 0x1000, scoped, tag = 'scoped mem for input reshape']
    %s3 = sshllo.u32 0, 4
    %v4 = vld [vmem:[%s0] sm:%s3]
    %5 = vst [vmem:[#allocation0] sm:%s3] %v4
    %v6 = vld [vmem:[#allocation0] sm:$0xf]
    %vm7 = vcmask 7168
    %8 = vst.msk [vmem:[%s1] ss:$4 sm:$0xf] %vm7, %v6
    %v9 = vld [vmem:[#allocation0] sm:$0xf]
    %10 = vrot.lane.b32.xlu0 %v9, 127
    %v11 = vpop.permute.xlu0 %10
    %vm12 = vcmask 7168
    %s13 = scalar_lea.vmem %s1, 1
    %14 = vst.msk [vmem:[%s13] ss:$4 sm:$0xf] %vm12, %v11
    %v15 = vld [vmem:[#allocation0] sm:$0xf]
    %16 = vrot.lane.b32.xlu0 %v15, 126
    %v17 = vpop.permute.xlu0 %16
    %vm18 = vcmask 7168
    %s19 = scalar_lea.vmem %s1, 2
    %20 = vst.msk [vmem:[%s19] ss:$4 sm:$0xf] %vm18, %v17
    %v21 = vld [vmem:[#allocation0] sm:$0xf]
    %22 = vrot.lane.b32.xlu0 %v21, 125
    %v23 = vpop.permute.xlu0 %22
    %vm24 = vcmask 7168
    %s25 = scalar_lea.vmem %s1, 3
    %26 = vst.msk [vmem:[%s25] ss:$4 sm:$0xf] %vm24, %v23

// kernel: squeeze.4
$region0: #{squeeze.4}
  %s0 = inlined_call_operand.vmem [shape: f32[16], index: 0, kind: input, shape index: {}]
  %s1 = inlined_call_operand.vmem [shape: f32[4,4], index: 1, kind: output, shape index: {}]
  $region1: #{squeeze.4} parent=0
    #allocation0 [shape = 'u8[4096]{0}', space=vmem, size = 0x1000, scoped, tag = 'scoped mem for output reshape']
    #allocation1 [shape = 'u8[4096]{0}', space=vmem, size = 0x1000, scoped, tag = 'scoped mem for input reshape']
    %s3 = sshllo.u32 0, 1
    %v4 = vld [vmem:[%s0] sm:%s3]
    %5 = vst [vmem:[#allocation1] sm:%s3] %v4
    %v6 = vld [vmem:[#allocation1] sm:$0x1]
    %vm7 = vcmask 31744
    %8 = vst.msk [vmem:[#allocation0] sm:$0x1] %vm7, %v6
    %v9 = vld [vmem:[#allocation1] sm:$0x1]
    %10 = vrot.lane.b32.xlu0 %v9, 124
    %v11 = vpop.permute.xlu0 %10
    %vm12 = vcmask 31744
    %s13 = scalar_lea.vmem [#allocation0], 1
    %14 = vst.msk [vmem:[%s13] sm:$0x1] %vm12, %v11
    %v15 = vld [vmem:[#allocation1] sm:$0x1]
    %16 = vrot.lane.b32.xlu0 %v15, 120
    %v17 = vpop.permute.xlu0 %16
    %vm18 = vcmask 31744
    %s19 = scalar_lea.vmem [#allocation0], 2
    %20 = vst.msk [vmem:[%s19] sm:$0x1] %vm18, %v17
    %v21 = vld [vmem:[#allocation1] sm:$0x1]
    %22 = vrot.lane.b32.xlu0 %v21, 116
    %v23 = vpop.permute.xlu0 %22
    %vm24 = vcmask 31744
    %s25 = scalar_lea.vmem [#allocation0], 3
    %26 = vst.msk [vmem:[%s25] sm:$0x1] %vm24, %v23
    %s28 = sshllo.u32 0, 4
    %v30 = vld [vmem:[#allocation0] sm:%s28]
    %s31 = sshllo.u32 0, 4
    %32 = vst [vmem:[%s1] sm:%s31] %v30

// kernel: unet_block_forward.4
$region0: #{unet_block_forward.4}
  #allocation0 [shape = 'u32[]', space=smem, size = 0x4, offset = 0x4, fixed_abs, tag = 'smem constant byte address 0x4 - core index']
  #allocation1 [shape = 'u32[144,128]{1,0:T(1,128)}', space=vmem, size = 0x12000, scoped, tag = 'internal scratch']
  %s0 = inlined_call_operand.vmem [shape: f32[2,4,64], index: 0, kind: input, shape index: {}]
  %s1 = inlined_call_operand.vmem [shape: f32[16,4], index: 1, kind: input, shape index: {}]
  %s2 = inlined_call_operand.vmem [shape: f32[16,1], index: 2, kind: input, shape index: {}]
  %s3 = inlined_call_operand.vmem [shape: f32[2,16,2], index: 3, kind: output, shape index: {}]
  %s4 = sld [smem:[#allocation0]]
  $region49: #{unet_block_forward.4} parent=0
    _
  %s6 = ssub.s32 1, %s4
  %s7 = scalar_select 0, %s6, %s4
  loop: start=0, step=1, limit=4
  $region2: #{unet_block_forward.4} parent=0 // loop_pre_header
    _
  $region3: #{unet_block_forward.4} parent=0 // loop_header
    %s9 = sphi 0, %s13
    %p10 = scmp.ge.s32.totalorder %s9, 4
    %s16 = sphi 0, %s28
    %s17 = sphi 0, %s24
    %s18 = sphi 0, %s16
    %s19 = sphi 0, %s17
    %s20 = sphi 0, %s18
    %s21 = sphi 0, %s19
    %s33 = sphi 0, %s35
    %s36 = sphi 0, %s33
    %s37 = sphi 0, %s36
    %s53 = sphi 0, %s37
    %s57 = sphi 0, %s57
    %s59 = sphi 0, %s57
    %s60 = sphi 0, %s59
    %s74 = sphi 0, %s60
    %s78 = sphi 0, %s78
    %s80 = sphi 0, %s78
    %s81 = sphi 0, %s80
    %s95 = sphi 0, %s81
    %s101 = sphi 0, %s103
    %s104 = sphi 0, %s101
    %s105 = sphi 0, %s104
    %s121 = sphi 0, %s105
  $region4: #{unet_block_forward.4} parent=0 // loop_header_branch
    %12 = sbr.rel (%p10) target = $region8
  $region5: #{unet_block_forward.4} parent=0 // loop_body
    %s14 = ssub.s32 %s9, 1
    %s15 = ssub.s32 %s9, 2
    %s22 = sadd.s32 1, %s17
    %p23 = scmp.ge.s32.totalorder %s22, 1
    %s24 = scalar_select %p23, 0, %s22
    %s25 = sadd.s32 1, %s16
    %s26 = scalar_select %p23, %s25, %s16
    %p27 = scmp.ge.s32.totalorder %s26, 2
    %s28 = scalar_select %p27, 0, %s26
    %s29 = ssub.s32 %s16, %s28
    %s30 = ssub.s32 %s17, %s24
    %s31 = sor.u32 %s29, %s30
    %p32 = scmp.eq.s32.totalorder %s31, 0
    %s34 = sadd.s32 %s33, 1
    %s35 = scalar_select %p32, %s33, %s34
    %p38 = pneg %p32
    %p39 = scmp.eq.s32.totalorder %s9, 1
    %p40 = por %p38, %p39
    %p41 = scmp.ne.s32.totalorder %s33, %s36
    %p42 = scmp.eq.s32.totalorder %s9, 0
    %p43 = por %p41, %p42
    %p44 = scmp.ne.s32.totalorder %s33, %s36
    %p45 = scmp.eq.s32.totalorder %s14, 1
    %p46 = por %p44, %p45
    %p47 = scmp.ne.s32.totalorder %s36, %s37
    %p48 = scmp.eq.s32.totalorder %s14, 0
    %p49 = por %p47, %p48
    %p50 = scmp.ne.s32.totalorder %s36, %s37
    %p51 = scmp.eq.s32.totalorder %s15, 1
    %p52 = por %p50, %p51
    %p54 = scmp.ne.s32.totalorder %s37, %s53
    %p55 = scmp.eq.s32.totalorder %s15, 0
    %p56 = por %p54, %p55
    %s58 = sadd.s32 %s57, 1
    %p61 = scmp.eq.s32.totalorder %s9, 1
    %p62 = scmp.ne.s32.totalorder %s57, %s59
    %p63 = scmp.eq.s32.totalorder %s9, 0
    %p64 = por %p62, %p63
    %p65 = scmp.ne.s32.totalorder %s57, %s59
    %p66 = scmp.eq.s32.totalorder %s14, 1
    %p67 = por %p65, %p66
    %p68 = scmp.ne.s32.totalorder %s59, %s60
    %p69 = scmp.eq.s32.totalorder %s14, 0
    %p70 = por %p68, %p69
    %p71 = scmp.ne.s32.totalorder %s59, %s60
    %p72 = scmp.eq.s32.totalorder %s15, 1
    %p73 = por %p71, %p72
    %p75 = scmp.ne.s32.totalorder %s60, %s74
    %p76 = scmp.eq.s32.totalorder %s15, 0
    %p77 = por %p75, %p76
    %s79 = sadd.s32 %s78, 1
    %p82 = scmp.eq.s32.totalorder %s9, 1
    %p83 = scmp.ne.s32.totalorder %s78, %s80
    %p84 = scmp.eq.s32.totalorder %s9, 0
    %p85 = por %p83, %p84
    %p86 = scmp.ne.s32.totalorder %s78, %s80
    %p87 = scmp.eq.s32.totalorder %s14, 1
    %p88 = por %p86, %p87
    %p89 = scmp.ne.s32.totalorder %s80, %s81
    %p90 = scmp.eq.s32.totalorder %s14, 0
    %p91 = por %p89, %p90
    %p92 = scmp.ne.s32.totalorder %s80, %s81
    %p93 = scmp.eq.s32.totalorder %s15, 1
    %p94 = por %p92, %p93
    %p96 = scmp.ne.s32.totalorder %s81, %s95
    %p97 = scmp.eq.s32.totalorder %s15, 0
    %p98 = por %p96, %p97
    %s99 = ssub.s32 %s16, %s28
    %p100 = scmp.eq.s32.totalorder %s99, 0
    %s102 = sadd.s32 %s101, 1
    %s103 = scalar_select %p100, %s101, %s102
    %p106 = pneg %p100
    %p107 = scmp.eq.s32.totalorder %s9, 1
    %p108 = por %p106, %p107
    %p109 = scmp.ne.s32.totalorder %s101, %s104
    %p110 = scmp.eq.s32.totalorder %s9, 0
    %p111 = por %p109, %p110
    %p112 = scmp.ne.s32.totalorder %s101, %s104
    %p113 = scmp.eq.s32.totalorder %s14, 1
    %p114 = por %p112, %p113
    %p115 = scmp.ne.s32.totalorder %s104, %s105
    %p116 = scmp.eq.s32.totalorder %s14, 0
    %p117 = por %p115, %p116
    %p118 = scmp.ne.s32.totalorder %s104, %s105
    %p119 = scmp.eq.s32.totalorder %s15, 1
    %p120 = por %p118, %p119
    %p122 = scmp.ne.s32.totalorder %s105, %s121
    %p123 = scmp.eq.s32.totalorder %s15, 0
    %p124 = por %p122, %p123
    %p125 = scmp.le.s32.totalorder 1, %s9
    %p126 = scmp.lt.s32.totalorder %s9, 3
    %p127 = pnand %p125, %p126
    %p128 = pneg %p127
    // Predicated region
    $region9: #{unet_block_forward.4} parent=5 // pred_check
      _
    $region10: #{unet_block_forward.4} parent=5 // pred_check_branch
      %130 = sbr.rel (%p127) target = $region12
    $region11: #{unet_block_forward.4} parent=5 // pred_region
      %s131 = ssub.s32 %s9, 1
      // Predicated region
      $region13: #{unet_block_forward.4} parent=11 // pred_check
        %p132 = pneg %p70
      $region14: #{unet_block_forward.4} parent=11 // pred_check_branch
        %134 = sbr.rel (%p132) target = $region16
      $region15: #{unet_block_forward.4} parent=11 // pred_region
        _
      $region16: #{unet_block_forward.4} parent=11 // pred_fallthru
        _
      // Predicated region
      $region17: #{unet_block_forward.4} parent=11 // pred_check
        %p135 = pneg %p91
      $region18: #{unet_block_forward.4} parent=11 // pred_check_branch
        %137 = sbr.rel (%p135) target = $region20
      $region19: #{unet_block_forward.4} parent=11 // pred_region
        _
      $region20: #{unet_block_forward.4} parent=11 // pred_fallthru
        _
    $region12: #{unet_block_forward.4} parent=5 // pred_fallthru
      _
    %p138 = scmp.lt.s32.totalorder %s9, 2
    // Predicated region
    $region21: #{unet_block_forward.4} parent=5 // pred_check
      %p139 = pneg %p138
    $region22: #{unet_block_forward.4} parent=5 // pred_check_branch
      %141 = sbr.rel (%p139) target = $region24
    $region23: #{unet_block_forward.4} parent=5 // pred_region
      // Predicated region
      $region25: #{unet_block_forward.4} parent=23 // pred_check
        %p142 = pneg %p43
      $region26: #{unet_block_forward.4} parent=23 // pred_check_branch
        %144 = sbr.rel (%p142) target = $region28
      $region27: #{unet_block_forward.4} parent=23 // pred_region
        %p145 = scmp.lt.s32.totalorder %s16, 1
        %s146 = scalar_select %p145, %s16, 1
        %p147 = scmp.lt.s32.totalorder %s17, 0
        %s148 = scalar_select %p147, %s17, 0
        %s149 = sadd.s32 %s148, %s146
        %s150 = smul.addr %s149, 4
        %s151 = scalar_lea.vmem %s0, %s150
      $region28: #{unet_block_forward.4} parent=23 // pred_fallthru
        _
    $region24: #{unet_block_forward.4} parent=5 // pred_fallthru
      _
    %p152 = scmp.le.s32.totalorder 1, %s9
    %p153 = scmp.lt.s32.totalorder %s9, 3
    %p154 = pnand %p152, %p153
    %p155 = pneg %p154
    // Predicated region
    $region29: #{unet_block_forward.4} parent=5 // pred_check
      _
    $region30: #{unet_block_forward.4} parent=5 // pred_check_branch
      %157 = sbr.rel (%p154) target = $region32
    $region31: #{unet_block_forward.4} parent=5 // pred_region
      %s158 = ssub.s32 %s9, 1
      %p159 = scmp.lt.s32.totalorder %s18, 1
      %s160 = scalar_select %p159, %s18, 1
      %p161 = scmp.lt.s32.totalorder %s19, 0
      %s162 = scalar_select %p161, %s19, 0
      %s163 = sadd.s32 %s162, %s160
      %s164 = smul.addr %s163, 4
      %s165 = scalar_lea.vmem %s0, %s164
      %p166 = pneg %p49
      %p167 = pneg %p46
      %p168 = pneg %p70
      %p169 = pneg %p67
      %p170 = pneg %p91
      %p171 = pneg %p88
      %p172 = pneg %p117
      %p173 = pneg %p114
      %p174 = scmp.lt.s32.totalorder %s18, 1
      %s175 = scalar_select %p174, %s18, 1
      %s176 = smul.addr %s175, 2
      %s177 = smul.addr %s176, 8
      %s178 = scalar_lea.vmem %s3, %s177
      %p179 = scmp.lt.s32.totalorder %s18, 1
      %s180 = scalar_select %p179, %s18, 1
      %p181 = scmp.lt.s32.totalorder %s19, 0
      %s182 = scalar_select %p181, %s19, 0
      %s183 = sadd.s32 %s182, %s180
      %s184 = smul.addr %s183, 4
      %s185 = scalar_lea.vmem %s0, %s184
      %p186 = scmp.lt.s32.totalorder %s18, 1
      %s187 = scalar_select %p186, %s18, 1
      %s188 = smul.addr %s187, 2
      %s189 = smul.addr %s188, 8
      %s190 = scalar_lea.vmem %s3, %s189
      %p191 = scmp.eq.s32.totalorder %s19, 0
      // Predicated region
      $region33: #{unet_block_forward.4} parent=31 // pred_check
        %p192 = pneg %p191
      $region34: #{unet_block_forward.4} parent=31 // pred_check_branch
        %194 = sbr.rel (%p192) target = $region36
      $region35: #{unet_block_forward.4} parent=31 // pred_region
        %vm195 = vcmask 15360
        %196 = vst.msk [vmem:[%s190] sm:$0xff] %vm195, 0.0
        %197 = vst.msk [vmem:[%s190 + $0x8] sm:$0xff] %vm195, 0.0
      $region36: #{unet_block_forward.4} parent=31 // pred_fallthru
        _
      %v198 = vld [vmem:[%s1] sm:$0xff]
      %v199 = vld [vmem:[%s1 + $0x8] sm:$0xff]
      %v200 = vld [vmem:[%s185] sm:$0xf]
      %v201 = vld [vmem:[%s2] sm:$0xff]
      %v202 = vld [vmem:[%s2 + $0x8] sm:$0xff]
      %204 = vset.pattern.permute.xlu0 0
      %205 = vperm.xlu0 %204, %v201
      %v206 = vpop.permute.xlu0 %205
      %209 = vset.pattern.permute.xlu0 0
      %210 = vperm.xlu0 %209, %v202
      %v211 = vpop.permute.xlu0 %210
      %vm213 = vcmask 31744
      %v215 = vsel %vm213, %v198, 0
      %v218 = vsel %vm213, %v199, 0
      %vm220 = vcmask 1043456
      %v222 = vsel %vm220, %v200, 0
      %224 = vmatprep.subr.mxu0 0.0
      %225 = vmatpush1.msra.mxu0 %v222
      %226 = vmatprep.subr.mxu0 0.0
      %227 = vmatpush1.msra.mxu0 0.0
      %228 = vmatprep.subr.mxu0 0.0
      %229 = vmatpush1.msra.mxu0 0.0
      %230 = vmatprep.subr.mxu0 0.0
      %231 = vmatpush1.msra.mxu0 0.0
      %232 = vmatprep.subr.mxu0 0.0
      %233 = vmatpush1.msra.mxu0 0.0
      %234 = vmatprep.subr.mxu0 0.0
      %235 = vmatpush1.msra.mxu0 0.0
      %236 = vmatprep.subr.mxu0 0.0
      %237 = vmatpush1.msra.mxu0 0.0
      %238 = vmatprep.subr.mxu0 0.0
      %239 = vmatpush1.msra.mxu0 0.0
      %240 = vmatprep.subr.mxu0 0.0
      %241 = vmatpush1.msra.mxu0 0.0
      %242 = vmatprep.subr.mxu0 0.0
      %243 = vmatpush1.msra.mxu0 0.0
      %244 = vmatprep.subr.mxu0 0.0
      %245 = vmatpush1.msra.mxu0 0.0
      %246 = vmatprep.subr.mxu0 0.0
      %247 = vmatpush1.msra.mxu0 0.0
      %248 = vmatprep.subr.mxu0 0.0
      %249 = vmatpush1.msra.mxu0 0.0
      %250 = vmatprep.subr.mxu0 0.0
      %251 = vmatpush1.msra.mxu0 0.0
      %252 = vmatprep.subr.mxu0 0.0
      %253 = vmatpush1.msra.mxu0 0.0
      %254 = vmatprep.subr.mxu0 0.0
      %255 = vmatpush1.msra.mxu0 0.0
      %256 = vmatprep.subr.mxu0 0.0
      %257 = vmatpush1.msra.mxu0 0.0
      %258 = vmatprep.subr.mxu0 0.0
      %259 = vmatpush1.msra.mxu0 0.0
      %260 = vmatprep.subr.mxu0 0.0
      %261 = vmatpush1.msra.mxu0 0.0
      %262 = vmatprep.subr.mxu0 0.0
      %263 = vmatpush1.msra.mxu0 0.0
      %264 = vmatprep.subr.mxu0 0.0
      %265 = vmatpush1.msra.mxu0 0.0
      %266 = vmatprep.subr.mxu0 0.0
      %267 = vmatpush1.msra.mxu0 0.0
      %268 = vmatprep.subr.mxu0 0.0
      %269 = vmatpush1.msra.mxu0 0.0
      %270 = vmatprep.subr.mxu0 0.0
      %271 = vmatpush1.msra.mxu0 0.0
      %272 = vmatprep.subr.mxu0 0.0
      %273 = vmatpush1.msra.mxu0 0.0
      %274 = vmatprep.subr.mxu0 0.0
      %275 = vmatpush1.msra.mxu0 0.0
      %276 = vmatprep.subr.mxu0 0.0
      %277 = vmatpush1.msra.mxu0 0.0
      %278 = vmatprep.subr.mxu0 0.0
      %279 = vmatpush1.msra.mxu0 0.0
      %280 = vmatprep.subr.mxu0 0.0
      %281 = vmatpush1.msra.mxu0 0.0
      %282 = vmatprep.subr.mxu0 0.0
      %283 = vmatpush1.msra.mxu0 0.0
      %284 = vmatprep.subr.mxu0 0.0
      %285 = vmatpush1.msra.mxu0 0.0
      %286 = vmatprep.subr.mxu0 0.0
      %287 = vmatpush1.msra.mxu0 0.0
      %288 = vmatprep.mubr.f32.mxu0 0.0
      %289 = vmatmul.mubr.f32.gmra.mrb[0].mxu0 %v215
      %v290 = vpop.f32.mrb[0].mxu0
      %v291 = vadd.f32 %v206, %v290
      %v292 = vpop.f32.mrb[0].mxu0
      %293 = vmatprep.mubr.f32.mxu0 0.0
      %294 = vmatmul.mubr.f32.gmra.mrb[0].mxu0 %v218
      %v295 = vpop.f32.mrb[0].mxu0
      %v296 = vadd.f32 %v211, %v295
      %v297 = vpop.f32.mrb[0].mxu0
      %298 = vdwg.mxu0
      %v299 = vmax.f32 %v291, 0.0
      %v300 = vmax.f32 %v296, 0.0
      %v301 = vld [vmem:[%s190] sm:$0xff]
      %v302 = vld [vmem:[%s190 + $0x8] sm:$0xff]
      %vm303 = vcmask 523264
      %v304 = vsel %vm303, %v299, 0.0
      %305 = vadd.xlane.f32.xlu0 %v304
      %v306 = vpop.xlane.xlu0 %305
      %v307 = vsel %vm303, %v300, 0.0
      %308 = vadd.xlane.f32.xlu0 %v307
      %v309 = vpop.xlane.xlu0 %308
      %v310 = vadd.f32 %v301, %v306
      %v311 = vadd.f32 %v302, %v309
      %vm312 = vcmask 7168
      %313 = vst.msk [vmem:[%s190] sm:$0xff] %vm312, %v310
      %314 = vst.msk [vmem:[%s190 + $0x8] sm:$0xff] %vm312, %v311
      %v315 = vld [vmem:[%s190] sm:$0xff]
      %v316 = vld [vmem:[%s190 + $0x8] sm:$0xff]
      %v317 = vmul.f32 %v299, %v299
      %v318 = vmul.f32 %v300, %v300
      %v319 = vsel %vm303, %v317, 0.0
      %320 = vadd.xlane.f32.xlu0 %v319
      %v321 = vpop.xlane.xlu0 %320
      %v322 = vsel %vm303, %v318, 0.0
      %323 = vadd.xlane.f32.xlu0 %v322
      %v324 = vpop.xlane.xlu0 %323
      %v325 = vadd.f32 %v315, %v321
      %v326 = vadd.f32 %v316, %v324
      %vm327 = vcmask 15368
      %328 = vst.msk [vmem:[%s190] sm:$0xff] %vm327, %v325
      %329 = vst.msk [vmem:[%s190 + $0x8] sm:$0xff] %vm327, %v326
      %p330 = scmp.lt.s32.totalorder %s18, 1
      %s331 = scalar_select %p330, %s18, 1
      %s332 = smul.addr %s331, 2
      %s333 = smul.addr %s332, 8
      %s334 = scalar_lea.vmem %s3, %s333
      // Predicated region
      $region37: #{unet_block_forward.4} parent=31 // pred_check
        %p335 = pneg %p114
      $region38: #{unet_block_forward.4} parent=31 // pred_check_branch
        %337 = sbr.rel (%p335) target = $region40
      $region39: #{unet_block_forward.4} parent=31 // pred_region
        _
      $region40: #{unet_block_forward.4} parent=31 // pred_fallthru
        _
    $region32: #{unet_block_forward.4} parent=5 // pred_fallthru
      _
    %p338 = scmp.le.s32.totalorder 2, %s9
    // Predicated region
    $region41: #{unet_block_forward.4} parent=5 // pred_check
      %p339 = pneg %p338
    $region42: #{unet_block_forward.4} parent=5 // pred_check_branch
      %341 = sbr.rel (%p339) target = $region44
    $region43: #{unet_block_forward.4} parent=5 // pred_region
      %s342 = ssub.s32 %s9, 2
      // Predicated region
      $region45: #{unet_block_forward.4} parent=43 // pred_check
        %p343 = pneg %p120
      $region46: #{unet_block_forward.4} parent=43 // pred_check_branch
        %345 = sbr.rel (%p343) target = $region48
      $region47: #{unet_block_forward.4} parent=43 // pred_region
        %p346 = scmp.lt.s32.totalorder %s20, 1
        %s347 = scalar_select %p346, %s20, 1
        %s348 = smul.addr %s347, 2
        %s349 = smul.addr %s348, 8
        %s350 = scalar_lea.vmem %s3, %s349
      $region48: #{unet_block_forward.4} parent=43 // pred_fallthru
        _
    $region44: #{unet_block_forward.4} parent=5 // pred_fallthru
      _
  $region6: #{unet_block_forward.4} parent=0 // loop_footer
    %s13 = sadd.s32 1, %s9
  $region7: #{unet_block_forward.4} parent=0 // loop_footer_branch
    %8 = sbr.rel target = $region3
  $region8: #{unet_block_forward.4} parent=0 // loop_exit
    _

// kernel: unet_block_forward.6
$region0: #{unet_block_forward.6}
  #allocation0 [shape = 'u32[]', space=smem, size = 0x4, offset = 0x4, fixed_abs, tag = 'smem constant byte address 0x4 - core index']
  #allocation1 [shape = 'u32[144,128]{1,0:T(1,128)}', space=vmem, size = 0x12000, scoped, tag = 'internal scratch']
  %s0 = inlined_call_operand.vmem [shape: f32[2,6,256], index: 0, kind: input, shape index: {}]
  %s1 = inlined_call_operand.vmem [shape: f32[4,6], index: 1, kind: input, shape index: {}]
  %s2 = inlined_call_operand.vmem [shape: f32[4,1], index: 2, kind: input, shape index: {}]
  %s3 = inlined_call_operand.vmem [shape: f32[2,4,2], index: 3, kind: output, shape index: {}]
  %s4 = sld [smem:[#allocation0]]
  $region49: #{unet_block_forward.6} parent=0
    _
  %s6 = ssub.s32 1, %s4
  %s7 = scalar_select 0, %s6, %s4
  loop: start=0, step=1, limit=4
  $region2: #{unet_block_forward.6} parent=0 // loop_pre_header
    _
  $region3: #{unet_block_forward.6} parent=0 // loop_header
    %s9 = sphi 0, %s13
    %p10 = scmp.ge.s32.totalorder %s9, 4
    %s16 = sphi 0, %s28
    %s17 = sphi 0, %s24
    %s18 = sphi 0, %s16
    %s19 = sphi 0, %s17
    %s20 = sphi 0, %s18
    %s21 = sphi 0, %s19
    %s33 = sphi 0, %s35
    %s36 = sphi 0, %s33
    %s37 = sphi 0, %s36
    %s53 = sphi 0, %s37
    %s57 = sphi 0, %s57
    %s59 = sphi 0, %s57
    %s60 = sphi 0, %s59
    %s74 = sphi 0, %s60
    %s78 = sphi 0, %s78
    %s80 = sphi 0, %s78
    %s81 = sphi 0, %s80
    %s95 = sphi 0, %s81
    %s101 = sphi 0, %s103
    %s104 = sphi 0, %s101
    %s105 = sphi 0, %s104
    %s121 = sphi 0, %s105
  $region4: #{unet_block_forward.6} parent=0 // loop_header_branch
    %12 = sbr.rel (%p10) target = $region8
  $region5: #{unet_block_forward.6} parent=0 // loop_body
    %s14 = ssub.s32 %s9, 1
    %s15 = ssub.s32 %s9, 2
    %s22 = sadd.s32 1, %s17
    %p23 = scmp.ge.s32.totalorder %s22, 1
    %s24 = scalar_select %p23, 0, %s22
    %s25 = sadd.s32 1, %s16
    %s26 = scalar_select %p23, %s25, %s16
    %p27 = scmp.ge.s32.totalorder %s26, 2
    %s28 = scalar_select %p27, 0, %s26
    %s29 = ssub.s32 %s16, %s28
    %s30 = ssub.s32 %s17, %s24
    %s31 = sor.u32 %s29, %s30
    %p32 = scmp.eq.s32.totalorder %s31, 0
    %s34 = sadd.s32 %s33, 1
    %s35 = scalar_select %p32, %s33, %s34
    %p38 = pneg %p32
    %p39 = scmp.eq.s32.totalorder %s9, 1
    %p40 = por %p38, %p39
    %p41 = scmp.ne.s32.totalorder %s33, %s36
    %p42 = scmp.eq.s32.totalorder %s9, 0
    %p43 = por %p41, %p42
    %p44 = scmp.ne.s32.totalorder %s33, %s36
    %p45 = scmp.eq.s32.totalorder %s14, 1
    %p46 = por %p44, %p45
    %p47 = scmp.ne.s32.totalorder %s36, %s37
    %p48 = scmp.eq.s32.totalorder %s14, 0
    %p49 = por %p47, %p48
    %p50 = scmp.ne.s32.totalorder %s36, %s37
    %p51 = scmp.eq.s32.totalorder %s15, 1
    %p52 = por %p50, %p51
    %p54 = scmp.ne.s32.totalorder %s37, %s53
    %p55 = scmp.eq.s32.totalorder %s15, 0
    %p56 = por %p54, %p55
    %s58 = sadd.s32 %s57, 1
    %p61 = scmp.eq.s32.totalorder %s9, 1
    %p62 = scmp.ne.s32.totalorder %s57, %s59
    %p63 = scmp.eq.s32.totalorder %s9, 0
    %p64 = por %p62, %p63
    %p65 = scmp.ne.s32.totalorder %s57, %s59
    %p66 = scmp.eq.s32.totalorder %s14, 1
    %p67 = por %p65, %p66
    %p68 = scmp.ne.s32.totalorder %s59, %s60
    %p69 = scmp.eq.s32.totalorder %s14, 0
    %p70 = por %p68, %p69
    %p71 = scmp.ne.s32.totalorder %s59, %s60
    %p72 = scmp.eq.s32.totalorder %s15, 1
    %p73 = por %p71, %p72
    %p75 = scmp.ne.s32.totalorder %s60, %s74
    %p76 = scmp.eq.s32.totalorder %s15, 0
    %p77 = por %p75, %p76
    %s79 = sadd.s32 %s78, 1
    %p82 = scmp.eq.s32.totalorder %s9, 1
    %p83 = scmp.ne.s32.totalorder %s78, %s80
    %p84 = scmp.eq.s32.totalorder %s9, 0
    %p85 = por %p83, %p84
    %p86 = scmp.ne.s32.totalorder %s78, %s80
    %p87 = scmp.eq.s32.totalorder %s14, 1
    %p88 = por %p86, %p87
    %p89 = scmp.ne.s32.totalorder %s80, %s81
    %p90 = scmp.eq.s32.totalorder %s14, 0
    %p91 = por %p89, %p90
    %p92 = scmp.ne.s32.totalorder %s80, %s81
    %p93 = scmp.eq.s32.totalorder %s15, 1
    %p94 = por %p92, %p93
    %p96 = scmp.ne.s32.totalorder %s81, %s95
    %p97 = scmp.eq.s32.totalorder %s15, 0
    %p98 = por %p96, %p97
    %s99 = ssub.s32 %s16, %s28
    %p100 = scmp.eq.s32.totalorder %s99, 0
    %s102 = sadd.s32 %s101, 1
    %s103 = scalar_select %p100, %s101, %s102
    %p106 = pneg %p100
    %p107 = scmp.eq.s32.totalorder %s9, 1
    %p108 = por %p106, %p107
    %p109 = scmp.ne.s32.totalorder %s101, %s104
    %p110 = scmp.eq.s32.totalorder %s9, 0
    %p111 = por %p109, %p110
    %p112 = scmp.ne.s32.totalorder %s101, %s104
    %p113 = scmp.eq.s32.totalorder %s14, 1
    %p114 = por %p112, %p113
    %p115 = scmp.ne.s32.totalorder %s104, %s105
    %p116 = scmp.eq.s32.totalorder %s14, 0
    %p117 = por %p115, %p116
    %p118 = scmp.ne.s32.totalorder %s104, %s105
    %p119 = scmp.eq.s32.totalorder %s15, 1
    %p120 = por %p118, %p119
    %p122 = scmp.ne.s32.totalorder %s105, %s121
    %p123 = scmp.eq.s32.totalorder %s15, 0
    %p124 = por %p122, %p123
    %p125 = scmp.le.s32.totalorder 1, %s9
    %p126 = scmp.lt.s32.totalorder %s9, 3
    %p127 = pnand %p125, %p126
    %p128 = pneg %p127
    // Predicated region
    $region9: #{unet_block_forward.6} parent=5 // pred_check
      _
    $region10: #{unet_block_forward.6} parent=5 // pred_check_branch
      %130 = sbr.rel (%p127) target = $region12
    $region11: #{unet_block_forward.6} parent=5 // pred_region
      %s131 = ssub.s32 %s9, 1
      // Predicated region
      $region13: #{unet_block_forward.6} parent=11 // pred_check
        %p132 = pneg %p70
      $region14: #{unet_block_forward.6} parent=11 // pred_check_branch
        %134 = sbr.rel (%p132) target = $region16
      $region15: #{unet_block_forward.6} parent=11 // pred_region
        _
      $region16: #{unet_block_forward.6} parent=11 // pred_fallthru
        _
      // Predicated region
      $region17: #{unet_block_forward.6} parent=11 // pred_check
        %p135 = pneg %p91
      $region18: #{unet_block_forward.6} parent=11 // pred_check_branch
        %137 = sbr.rel (%p135) target = $region20
      $region19: #{unet_block_forward.6} parent=11 // pred_region
        _
      $region20: #{unet_block_forward.6} parent=11 // pred_fallthru
        _
    $region12: #{unet_block_forward.6} parent=5 // pred_fallthru
      _
    %p138 = scmp.lt.s32.totalorder %s9, 2
    // Predicated region
    $region21: #{unet_block_forward.6} parent=5 // pred_check
      %p139 = pneg %p138
    $region22: #{unet_block_forward.6} parent=5 // pred_check_branch
      %141 = sbr.rel (%p139) target = $region24
    $region23: #{unet_block_forward.6} parent=5 // pred_region
      // Predicated region
      $region25: #{unet_block_forward.6} parent=23 // pred_check
        %p142 = pneg %p43
      $region26: #{unet_block_forward.6} parent=23 // pred_check_branch
        %144 = sbr.rel (%p142) target = $region28
      $region27: #{unet_block_forward.6} parent=23 // pred_region
        %s145 = smul.u32 2, %s17
        %p146 = scmp.lt.s32.totalorder %s16, 1
        %s147 = scalar_select %p146, %s16, 1
        %p148 = scmp.lt.s32.totalorder %s145, 1
        %s149 = scalar_select %p148, %s145, 1
        %s150 = smul.addr %s147, 2
        %s151 = sadd.s32 %s149, %s150
        %s152 = smul.addr %s151, 8
        %s153 = scalar_lea.vmem %s0, %s152
        %s154 = smul.u32 2, %s17
      $region28: #{unet_block_forward.6} parent=23 // pred_fallthru
        _
    $region24: #{unet_block_forward.6} parent=5 // pred_fallthru
      _
    %p155 = scmp.le.s32.totalorder 1, %s9
    %p156 = scmp.lt.s32.totalorder %s9, 3
    %p157 = pnand %p155, %p156
    %p158 = pneg %p157
    // Predicated region
    $region29: #{unet_block_forward.6} parent=5 // pred_check
      _
    $region30: #{unet_block_forward.6} parent=5 // pred_check_branch
      %160 = sbr.rel (%p157) target = $region32
    $region31: #{unet_block_forward.6} parent=5 // pred_region
      %s161 = ssub.s32 %s9, 1
      %s162 = smul.u32 2, %s19
      %p163 = scmp.lt.s32.totalorder %s18, 1
      %s164 = scalar_select %p163, %s18, 1
      %p165 = scmp.lt.s32.totalorder %s162, 1
      %s166 = scalar_select %p165, %s162, 1
      %s167 = smul.addr %s164, 2
      %s168 = sadd.s32 %s166, %s167
      %s169 = smul.addr %s168, 8
      %s170 = scalar_lea.vmem %s0, %s169
      %p171 = pneg %p49
      %p172 = pneg %p46
      %p173 = pneg %p70
      %p174 = pneg %p67
      %p175 = pneg %p91
      %p176 = pneg %p88
      %p177 = pneg %p117
      %p178 = pneg %p114
      %p179 = scmp.lt.s32.totalorder %s18, 1
      %s180 = scalar_select %p179, %s18, 1
      %s181 = smul.addr %s180, 4
      %s182 = scalar_lea.vmem %s3, %s181
      %s183 = smul.u32 2, %s19
      %p184 = scmp.lt.s32.totalorder %s18, 1
      %s185 = scalar_select %p184, %s18, 1
      %p186 = scmp.lt.s32.totalorder %s183, 1
      %s187 = scalar_select %p186, %s183, 1
      %s188 = smul.addr %s185, 2
      %s189 = sadd.s32 %s187, %s188
      %s190 = smul.addr %s189, 8
      %s191 = scalar_lea.vmem %s0, %s190
      %s192 = smul.u32 2, %s19
      %p193 = scmp.lt.s32.totalorder %s18, 1
      %s194 = scalar_select %p193, %s18, 1
      %s195 = smul.addr %s194, 4
      %s196 = scalar_lea.vmem %s3, %s195
      %p197 = scmp.eq.s32.totalorder %s19, 0
      // Predicated region
      $region33: #{unet_block_forward.6} parent=31 // pred_check
        %p198 = pneg %p197
      $region34: #{unet_block_forward.6} parent=31 // pred_check_branch
        %200 = sbr.rel (%p198) target = $region36
      $region35: #{unet_block_forward.6} parent=31 // pred_region
        %vm201 = vcmask 11264
        %202 = vst.msk [vmem:[%s196] sm:$0xf] %vm201, 0.0
      $region36: #{unet_block_forward.6} parent=31 // pred_fallthru
        _
      %v203 = vld [vmem:[%s1] sm:$0xf]
      %v204 = vld [vmem:[%s191] sm:$0x3f]
      %v205 = vld [vmem:[%s191 + $0x8] sm:$0x3f]
      %v206 = vld [vmem:[%s2] sm:$0xf]
      %208 = vset.pattern.permute.xlu0 0
      %209 = vperm.xlu0 %208, %v206
      %v210 = vpop.permute.xlu0 %209
      %vm212 = vcmask 48128
      %v214 = vsel %vm212, %v203, 0
      %vm216 = vcmask 1045504
      %v218 = vsel %vm216, %v204, 0
      %v221 = vsel %vm216, %v205, 0
      %223 = vmatprep.subr.mxu0 %v221
      %224 = vmatpush1.msra.mxu0 %v218
      %225 = vmatprep.subr.mxu0 0.0
      %226 = vmatpush1.msra.mxu0 0.0
      %227 = vmatprep.subr.mxu0 0.0
      %228 = vmatpush1.msra.mxu0 0.0
      %229 = vmatprep.subr.mxu0 0.0
      %230 = vmatpush1.msra.mxu0 0.0
      %231 = vmatprep.subr.mxu0 0.0
      %232 = vmatpush1.msra.mxu0 0.0
      %233 = vmatprep.subr.mxu0 0.0
      %234 = vmatpush1.msra.mxu0 0.0
      %235 = vmatprep.subr.mxu0 0.0
      %236 = vmatpush1.msra.mxu0 0.0
      %237 = vmatprep.subr.mxu0 0.0
      %238 = vmatpush1.msra.mxu0 0.0
      %239 = vmatprep.subr.mxu0 0.0
      %240 = vmatpush1.msra.mxu0 0.0
      %241 = vmatprep.subr.mxu0 0.0
      %242 = vmatpush1.msra.mxu0 0.0
      %243 = vmatprep.subr.mxu0 0.0
      %244 = vmatpush1.msra.mxu0 0.0
      %245 = vmatprep.subr.mxu0 0.0
      %246 = vmatpush1.msra.mxu0 0.0
      %247 = vmatprep.subr.mxu0 0.0
      %248 = vmatpush1.msra.mxu0 0.0
      %249 = vmatprep.subr.mxu0 0.0
      %250 = vmatpush1.msra.mxu0 0.0
      %251 = vmatprep.subr.mxu0 0.0
      %252 = vmatpush1.msra.mxu0 0.0
      %253 = vmatprep.subr.mxu0 0.0
      %254 = vmatpush1.msra.mxu0 0.0
      %255 = vmatprep.subr.mxu0 0.0
      %256 = vmatpush1.msra.mxu0 0.0
      %257 = vmatprep.subr.mxu0 0.0
      %258 = vmatpush1.msra.mxu0 0.0
      %259 = vmatprep.subr.mxu0 0.0
      %260 = vmatpush1.msra.mxu0 0.0
      %261 = vmatprep.subr.mxu0 0.0
      %262 = vmatpush1.msra.mxu0 0.0
      %263 = vmatprep.subr.mxu0 0.0
      %264 = vmatpush1.msra.mxu0 0.0
      %265 = vmatprep.subr.mxu0 0.0
      %266 = vmatpush1.msra.mxu0 0.0
      %267 = vmatprep.subr.mxu0 0.0
      %268 = vmatpush1.msra.mxu0 0.0
      %269 = vmatprep.subr.mxu0 0.0
      %270 = vmatpush1.msra.mxu0 0.0
      %271 = vmatprep.subr.mxu0 0.0
      %272 = vmatpush1.msra.mxu0 0.0
      %273 = vmatprep.subr.mxu0 0.0
      %274 = vmatpush1.msra.mxu0 0.0
      %275 = vmatprep.subr.mxu0 0.0
      %276 = vmatpush1.msra.mxu0 0.0
      %277 = vmatprep.subr.mxu0 0.0
      %278 = vmatpush1.msra.mxu0 0.0
      %279 = vmatprep.subr.mxu0 0.0
      %280 = vmatpush1.msra.mxu0 0.0
      %281 = vmatprep.subr.mxu0 0.0
      %282 = vmatpush1.msra.mxu0 0.0
      %283 = vmatprep.subr.mxu0 0.0
      %284 = vmatpush1.msra.mxu0 0.0
      %285 = vmatprep.subr.mxu0 0.0
      %286 = vmatpush1.msra.mxu0 0.0
      %287 = vmatprep.mubr.f32.mxu0 0.0
      %288 = vmatmul.mubr.f32.gmra.mrb[0].mxu0 %v214
      %v289 = vpop.f32.mrb[0].mxu0
      %v290 = vadd.f32 %v210, %v289
      %v291 = vpop.f32.mrb[0].mxu0
      %v292 = vadd.f32 %v210, %v291
      %293 = vdwg.mxu0
      %v294 = vmax.f32 %v290, 0.0
      %v295 = vmax.f32 %v292, 0.0
      %v296 = vld [vmem:[%s196] sm:$0xf]
      %vm297 = vcmask 1043456
      %v298 = vsel %vm297, %v294, 0.0
      %v299 = vsel %vm297, %v295, 0.0
      %v300 = vadd.f32 %v298, %v299
      %301 = vadd.xlane.f32.xlu0 %v300
      %v302 = vpop.xlane.xlu0 %301
      %v303 = vadd.f32 %v296, %v302
      %vm304 = vcmask 3072
      %305 = vst.msk [vmem:[%s196] sm:$0xf] %vm304, %v303
      %v306 = vld [vmem:[%s196] sm:$0xf]
      %v307 = vmul.f32 %v294, %v294
      %v308 = vmul.f32 %v295, %v295
      %v309 = vsel %vm297, %v307, 0.0
      %v310 = vsel %vm297, %v308, 0.0
      %v311 = vadd.f32 %v309, %v310
      %312 = vadd.xlane.f32.xlu0 %v311
      %v313 = vpop.xlane.xlu0 %312
      %v314 = vadd.f32 %v306, %v313
      %vm315 = vcmask 11272
      %316 = vst.msk [vmem:[%s196] sm:$0xf] %vm315, %v314
      %p317 = scmp.lt.s32.totalorder %s18, 1
      %s318 = scalar_select %p317, %s18, 1
      %s319 = smul.addr %s318, 4
      %s320 = scalar_lea.vmem %s3, %s319
      // Predicated region
      $region37: #{unet_block_forward.6} parent=31 // pred_check
        %p321 = pneg %p114
      $region38: #{unet_block_forward.6} parent=31 // pred_check_branch
        %323 = sbr.rel (%p321) target = $region40
      $region39: #{unet_block_forward.6} parent=31 // pred_region
        _
      $region40: #{unet_block_forward.6} parent=31 // pred_fallthru
        _
    $region32: #{unet_block_forward.6} parent=5 // pred_fallthru
      _
    %p324 = scmp.le.s32.totalorder 2, %s9
    // Predicated region
    $region41: #{unet_block_forward.6} parent=5 // pred_check
      %p325 = pneg %p324
    $region42: #{unet_block_forward.6} parent=5 // pred_check_branch
      %327 = sbr.rel (%p325) target = $region44
    $region43: #{unet_block_forward.6} parent=5 // pred_region
      %s328 = ssub.s32 %s9, 2
      // Predicated region
      $region45: #{unet_block_forward.6} parent=43 // pred_check
        %p329 = pneg %p120
      $region46: #{unet_block_forward.6} parent=43 // pred_check_branch
        %331 = sbr.rel (%p329) target = $region48
      $region47: #{unet_block_forward.6} parent=43 // pred_region
        %p332 = scmp.lt.s32.totalorder %s20, 1
        %s333 = scalar_select %p332, %s20, 1
        %s334 = smul.addr %s333, 4
        %s335 = scalar_lea.vmem %s3, %s334
      $region48: #{unet_block_forward.6} parent=43 // pred_fallthru
        _
    $region44: #{unet_block_forward.6} parent=5 // pred_fallthru
      _
  $region6: #{unet_block_forward.6} parent=0 // loop_footer
    %s13 = sadd.s32 1, %s9
  $region7: #{unet_block_forward.6} parent=0 // loop_footer_branch
    %8 = sbr.rel target = $region3
  $region8: #{unet_block_forward.6} parent=0 // loop_exit
    _

// kernel: unet_block_forward.7
$region0: #{unet_block_forward.7}
  #allocation0 [shape = 'u32[]', space=smem, size = 0x4, offset = 0x4, fixed_abs, tag = 'smem constant byte address 0x4 - core index']
  #allocation1 [shape = 'u32[144,128]{1,0:T(1,128)}', space=vmem, size = 0x12000, scoped, tag = 'internal scratch']
  %s0 = inlined_call_operand.vmem [shape: f32[2,6,256], index: 0, kind: input, shape index: {}]
  %s1 = inlined_call_operand.vmem [shape: f32[4,6], index: 1, kind: input, shape index: {}]
  %s2 = inlined_call_operand.vmem [shape: f32[4,1], index: 2, kind: input, shape index: {}]
  %s3 = inlined_call_operand.vmem [shape: f32[4,1], index: 3, kind: input, shape index: {}]
  %s4 = inlined_call_operand.vmem [shape: f32[4,1], index: 4, kind: input, shape index: {}]
  %s5 = inlined_call_operand.vmem [shape: f32[2,4,256], index: 5, kind: output, shape index: {}]
  %s6 = sld [smem:[#allocation0]]
  $region53: #{unet_block_forward.7} parent=0
    _
  %s8 = ssub.s32 1, %s6
  %s9 = scalar_select 0, %s8, %s6
  loop: start=0, step=1, limit=4
  $region2: #{unet_block_forward.7} parent=0 // loop_pre_header
    _
  $region3: #{unet_block_forward.7} parent=0 // loop_header
    %s11 = sphi 0, %s15
    %p12 = scmp.ge.s32.totalorder %s11, 4
    %s18 = sphi 0, %s30
    %s19 = sphi 0, %s26
    %s20 = sphi 0, %s18
    %s21 = sphi 0, %s19
    %s22 = sphi 0, %s20
    %s23 = sphi 0, %s21
    %s35 = sphi 0, %s37
    %s38 = sphi 0, %s35
    %s39 = sphi 0, %s38
    %s55 = sphi 0, %s39
    %s59 = sphi 0, %s59
    %s61 = sphi 0, %s59
    %s62 = sphi 0, %s61
    %s76 = sphi 0, %s62
    %s80 = sphi 0, %s80
    %s82 = sphi 0, %s80
    %s83 = sphi 0, %s82
    %s97 = sphi 0, %s83
    %s101 = sphi 0, %s101
    %s103 = sphi 0, %s101
    %s104 = sphi 0, %s103
    %s118 = sphi 0, %s104
    %s122 = sphi 0, %s122
    %s124 = sphi 0, %s122
    %s125 = sphi 0, %s124
    %s139 = sphi 0, %s125
    %s147 = sphi 0, %s149
    %s150 = sphi 0, %s147
    %s151 = sphi 0, %s150
    %s167 = sphi 0, %s151
  $region4: #{unet_block_forward.7} parent=0 // loop_header_branch
    %14 = sbr.rel (%p12) target = $region8
  $region5: #{unet_block_forward.7} parent=0 // loop_body
    %s16 = ssub.s32 %s11, 1
    %s17 = ssub.s32 %s11, 2
    %s24 = sadd.s32 1, %s19
    %p25 = scmp.ge.s32.totalorder %s24, 1
    %s26 = scalar_select %p25, 0, %s24
    %s27 = sadd.s32 1, %s18
    %s28 = scalar_select %p25, %s27, %s18
    %p29 = scmp.ge.s32.totalorder %s28, 2
    %s30 = scalar_select %p29, 0, %s28
    %s31 = ssub.s32 %s18, %s30
    %s32 = ssub.s32 %s19, %s26
    %s33 = sor.u32 %s31, %s32
    %p34 = scmp.eq.s32.totalorder %s33, 0
    %s36 = sadd.s32 %s35, 1
    %s37 = scalar_select %p34, %s35, %s36
    %p40 = pneg %p34
    %p41 = scmp.eq.s32.totalorder %s11, 1
    %p42 = por %p40, %p41
    %p43 = scmp.ne.s32.totalorder %s35, %s38
    %p44 = scmp.eq.s32.totalorder %s11, 0
    %p45 = por %p43, %p44
    %p46 = scmp.ne.s32.totalorder %s35, %s38
    %p47 = scmp.eq.s32.totalorder %s16, 1
    %p48 = por %p46, %p47
    %p49 = scmp.ne.s32.totalorder %s38, %s39
    %p50 = scmp.eq.s32.totalorder %s16, 0
    %p51 = por %p49, %p50
    %p52 = scmp.ne.s32.totalorder %s38, %s39
    %p53 = scmp.eq.s32.totalorder %s17, 1
    %p54 = por %p52, %p53
    %p56 = scmp.ne.s32.totalorder %s39, %s55
    %p57 = scmp.eq.s32.totalorder %s17, 0
    %p58 = por %p56, %p57
    %s60 = sadd.s32 %s59, 1
    %p63 = scmp.eq.s32.totalorder %s11, 1
    %p64 = scmp.ne.s32.totalorder %s59, %s61
    %p65 = scmp.eq.s32.totalorder %s11, 0
    %p66 = por %p64, %p65
    %p67 = scmp.ne.s32.totalorder %s59, %s61
    %p68 = scmp.eq.s32.totalorder %s16, 1
    %p69 = por %p67, %p68
    %p70 = scmp.ne.s32.totalorder %s61, %s62
    %p71 = scmp.eq.s32.totalorder %s16, 0
    %p72 = por %p70, %p71
    %p73 = scmp.ne.s32.totalorder %s61, %s62
    %p74 = scmp.eq.s32.totalorder %s17, 1
    %p75 = por %p73, %p74
    %p77 = scmp.ne.s32.totalorder %s62, %s76
    %p78 = scmp.eq.s32.totalorder %s17, 0
    %p79 = por %p77, %p78
    %s81 = sadd.s32 %s80, 1
    %p84 = scmp.eq.s32.totalorder %s11, 1
    %p85 = scmp.ne.s32.totalorder %s80, %s82
    %p86 = scmp.eq.s32.totalorder %s11, 0
    %p87 = por %p85, %p86
    %p88 = scmp.ne.s32.totalorder %s80, %s82
    %p89 = scmp.eq.s32.totalorder %s16, 1
    %p90 = por %p88, %p89
    %p91 = scmp.ne.s32.totalorder %s82, %s83
    %p92 = scmp.eq.s32.totalorder %s16, 0
    %p93 = por %p91, %p92
    %p94 = scmp.ne.s32.totalorder %s82, %s83
    %p95 = scmp.eq.s32.totalorder %s17, 1
    %p96 = por %p94, %p95
    %p98 = scmp.ne.s32.totalorder %s83, %s97
    %p99 = scmp.eq.s32.totalorder %s17, 0
    %p100 = por %p98, %p99
    %s102 = sadd.s32 %s101, 1
    %p105 = scmp.eq.s32.totalorder %s11, 1
    %p106 = scmp.ne.s32.totalorder %s101, %s103
    %p107 = scmp.eq.s32.totalorder %s11, 0
    %p108 = por %p106, %p107
    %p109 = scmp.ne.s32.totalorder %s101, %s103
    %p110 = scmp.eq.s32.totalorder %s16, 1
    %p111 = por %p109, %p110
    %p112 = scmp.ne.s32.totalorder %s103, %s104
    %p113 = scmp.eq.s32.totalorder %s16, 0
    %p114 = por %p112, %p113
    %p115 = scmp.ne.s32.totalorder %s103, %s104
    %p116 = scmp.eq.s32.totalorder %s17, 1
    %p117 = por %p115, %p116
    %p119 = scmp.ne.s32.totalorder %s104, %s118
    %p120 = scmp.eq.s32.totalorder %s17, 0
    %p121 = por %p119, %p120
    %s123 = sadd.s32 %s122, 1
    %p126 = scmp.eq.s32.totalorder %s11, 1
    %p127 = scmp.ne.s32.totalorder %s122, %s124
    %p128 = scmp.eq.s32.totalorder %s11, 0
    %p129 = por %p127, %p128
    %p130 = scmp.ne.s32.totalorder %s122, %s124
    %p131 = scmp.eq.s32.totalorder %s16, 1
    %p132 = por %p130, %p131
    %p133 = scmp.ne.s32.totalorder %s124, %s125
    %p134 = scmp.eq.s32.totalorder %s16, 0
    %p135 = por %p133, %p134
    %p136 = scmp.ne.s32.totalorder %s124, %s125
    %p137 = scmp.eq.s32.totalorder %s17, 1
    %p138 = por %p136, %p137
    %p140 = scmp.ne.s32.totalorder %s125, %s139
    %p141 = scmp.eq.s32.totalorder %s17, 0
    %p142 = por %p140, %p141
    %s143 = ssub.s32 %s18, %s30
    %s144 = ssub.s32 %s19, %s26
    %s145 = sor.u32 %s143, %s144
    %p146 = scmp.eq.s32.totalorder %s145, 0
    %s148 = sadd.s32 %s147, 1
    %s149 = scalar_select %p146, %s147, %s148
    %p152 = pneg %p146
    %p153 = scmp.eq.s32.totalorder %s11, 1
    %p154 = por %p152, %p153
    %p155 = scmp.ne.s32.totalorder %s147, %s150
    %p156 = scmp.eq.s32.totalorder %s11, 0
    %p157 = por %p155, %p156
    %p158 = scmp.ne.s32.totalorder %s147, %s150
    %p159 = scmp.eq.s32.totalorder %s16, 1
    %p160 = por %p158, %p159
    %p161 = scmp.ne.s32.totalorder %s150, %s151
    %p162 = scmp.eq.s32.totalorder %s16, 0
    %p163 = por %p161, %p162
    %p164 = scmp.ne.s32.totalorder %s150, %s151
    %p165 = scmp.eq.s32.totalorder %s17, 1
    %p166 = por %p164, %p165
    %p168 = scmp.ne.s32.totalorder %s151, %s167
    %p169 = scmp.eq.s32.totalorder %s17, 0
    %p170 = por %p168, %p169
    %p171 = scmp.le.s32.totalorder 1, %s11
    %p172 = scmp.lt.s32.totalorder %s11, 3
    %p173 = pnand %p171, %p172
    %p174 = pneg %p173
    // Predicated region
    $region9: #{unet_block_forward.7} parent=5 // pred_check
      _
    $region10: #{unet_block_forward.7} parent=5 // pred_check_branch
      %176 = sbr.rel (%p173) target = $region12
    $region11: #{unet_block_forward.7} parent=5 // pred_region
      %s177 = ssub.s32 %s11, 1
      // Predicated region
      $region13: #{unet_block_forward.7} parent=11 // pred_check
        %p178 = pneg %p72
      $region14: #{unet_block_forward.7} parent=11 // pred_check_branch
        %180 = sbr.rel (%p178) target = $region16
      $region15: #{unet_block_forward.7} parent=11 // pred_region
        _
      $region16: #{unet_block_forward.7} parent=11 // pred_fallthru
        _
      // Predicated region
      $region17: #{unet_block_forward.7} parent=11 // pred_check
        %p181 = pneg %p93
      $region18: #{unet_block_forward.7} parent=11 // pred_check_branch
        %183 = sbr.rel (%p181) target = $region20
      $region19: #{unet_block_forward.7} parent=11 // pred_region
        _
      $region20: #{unet_block_forward.7} parent=11 // pred_fallthru
        _
      // Predicated region
      $region21: #{unet_block_forward.7} parent=11 // pred_check
        %p184 = pneg %p114
      $region22: #{unet_block_forward.7} parent=11 // pred_check_branch
        %186 = sbr.rel (%p184) target = $region24
      $region23: #{unet_block_forward.7} parent=11 // pred_region
        _
      $region24: #{unet_block_forward.7} parent=11 // pred_fallthru
        _
      // Predicated region
      $region25: #{unet_block_forward.7} parent=11 // pred_check
        %p187 = pneg %p135
      $region26: #{unet_block_forward.7} parent=11 // pred_check_branch
        %189 = sbr.rel (%p187) target = $region28
      $region27: #{unet_block_forward.7} parent=11 // pred_region
        _
      $region28: #{unet_block_forward.7} parent=11 // pred_fallthru
        _
    $region12: #{unet_block_forward.7} parent=5 // pred_fallthru
      _
    %p190 = scmp.lt.s32.totalorder %s11, 2
    // Predicated region
    $region29: #{unet_block_forward.7} parent=5 // pred_check
      %p191 = pneg %p190
    $region30: #{unet_block_forward.7} parent=5 // pred_check_branch
      %193 = sbr.rel (%p191) target = $region32
    $region31: #{unet_block_forward.7} parent=5 // pred_region
      // Predicated region
      $region33: #{unet_block_forward.7} parent=31 // pred_check
        %p194 = pneg %p45
      $region34: #{unet_block_forward.7} parent=31 // pred_check_branch
        %196 = sbr.rel (%p194) target = $region36
      $region35: #{unet_block_forward.7} parent=31 // pred_region
        %s197 = smul.u32 2, %s19
        %p198 = scmp.lt.s32.totalorder %s18, 1
        %s199 = scalar_select %p198, %s18, 1
        %p200 = scmp.lt.s32.totalorder %s197, 1
        %s201 = scalar_select %p200, %s197, 1
        %s202 = smul.addr %s199, 2
        %s203 = sadd.s32 %s201, %s202
        %s204 = smul.addr %s203, 8
        %s205 = scalar_lea.vmem %s0, %s204
        %s206 = smul.u32 2, %s19
      $region36: #{unet_block_forward.7} parent=31 // pred_fallthru
        _
    $region32: #{unet_block_forward.7} parent=5 // pred_fallthru
      _
    %p207 = scmp.le.s32.totalorder 1, %s11
    %p208 = scmp.lt.s32.totalorder %s11, 3
    %p209 = pnand %p207, %p208
    %p210 = pneg %p209
    // Predicated region
    $region37: #{unet_block_forward.7} parent=5 // pred_check
      _
    $region38: #{unet_block_forward.7} parent=5 // pred_check_branch
      %212 = sbr.rel (%p209) target = $region40
    $region39: #{unet_block_forward.7} parent=5 // pred_region
      %s213 = ssub.s32 %s11, 1
      %s214 = smul.u32 2, %s21
      %p215 = scmp.lt.s32.totalorder %s20, 1
      %s216 = scalar_select %p215, %s20, 1
      %p217 = scmp.lt.s32.totalorder %s214, 1
      %s218 = scalar_select %p217, %s214, 1
      %s219 = smul.addr %s216, 2
      %s220 = sadd.s32 %s218, %s219
      %s221 = smul.addr %s220, 8
      %s222 = scalar_lea.vmem %s0, %s221
      %p223 = pneg %p51
      %p224 = pneg %p48
      %p225 = pneg %p72
      %p226 = pneg %p69
      %p227 = pneg %p93
      %p228 = pneg %p90
      %p229 = pneg %p114
      %p230 = pneg %p111
      %p231 = pneg %p135
      %p232 = pneg %p132
      %p233 = pneg %p163
      %p234 = pneg %p160
      %s235 = smul.u32 2, %s21
      %p236 = scmp.lt.s32.totalorder %s20, 1
      %s237 = scalar_select %p236, %s20, 1
      %p238 = scmp.lt.s32.totalorder %s235, 1
      %s239 = scalar_select %p238, %s235, 1
      %s240 = smul.addr %s237, 2
      %s241 = sadd.s32 %s239, %s240
      %s242 = smul.addr %s241, 4
      %s243 = scalar_lea.vmem %s5, %s242
      %s244 = smul.u32 2, %s21
      %p245 = scmp.lt.s32.totalorder %s20, 1
      %s246 = scalar_select %p245, %s20, 1
      %p247 = scmp.lt.s32.totalorder %s244, 1
      %s248 = scalar_select %p247, %s244, 1
      %s249 = smul.addr %s246, 2
      %s250 = sadd.s32 %s248, %s249
      %s251 = smul.addr %s250, 8
      %s252 = scalar_lea.vmem %s0, %s251
      %s253 = smul.u32 2, %s21
      %s254 = smul.u32 2, %s21
      %p255 = scmp.lt.s32.totalorder %s20, 1
      %s256 = scalar_select %p255, %s20, 1
      %p257 = scmp.lt.s32.totalorder %s254, 1
      %s258 = scalar_select %p257, %s254, 1
      %s259 = smul.addr %s256, 2
      %s260 = sadd.s32 %s258, %s259
      %s261 = smul.addr %s260, 4
      %s262 = scalar_lea.vmem %s5, %s261
      %s263 = smul.u32 2, %s21
      %v264 = vld [vmem:[%s1] sm:$0xf]
      %v265 = vld [vmem:[%s252] sm:$0x3f]
      %v266 = vld [vmem:[%s252 + $0x8] sm:$0x3f]
      %v267 = vld [vmem:[%s2] sm:$0xf]
      %269 = vset.pattern.permute.xlu0 0
      %270 = vperm.xlu0 %269, %v267
      %v271 = vpop.permute.xlu0 %270
      %vm273 = vcmask 48128
      %v275 = vsel %vm273, %v264, 0
      %vm277 = vcmask 1045504
      %v279 = vsel %vm277, %v265, 0
      %v282 = vsel %vm277, %v266, 0
      %284 = vmatprep.subr.mxu0 %v282
      %285 = vmatpush1.msra.mxu0 %v279
      %286 = vmatprep.subr.mxu0 0.0
      %287 = vmatpush1.msra.mxu0 0.0
      %288 = vmatprep.subr.mxu0 0.0
      %289 = vmatpush1.msra.mxu0 0.0
      %290 = vmatprep.subr.mxu0 0.0
      %291 = vmatpush1.msra.mxu0 0.0
      %292 = vmatprep.subr.mxu0 0.0
      %293 = vmatpush1.msra.mxu0 0.0
      %294 = vmatprep.subr.mxu0 0.0
      %295 = vmatpush1.msra.mxu0 0.0
      %296 = vmatprep.subr.mxu0 0.0
      %297 = vmatpush1.msra.mxu0 0.0
      %298 = vmatprep.subr.mxu0 0.0
      %299 = vmatpush1.msra.mxu0 0.0
      %300 = vmatprep.subr.mxu0 0.0
      %301 = vmatpush1.msra.mxu0 0.0
      %302 = vmatprep.subr.mxu0 0.0
      %303 = vmatpush1.msra.mxu0 0.0
      %304 = vmatprep.subr.mxu0 0.0
      %305 = vmatpush1.msra.mxu0 0.0
      %306 = vmatprep.subr.mxu0 0.0
      %307 = vmatpush1.msra.mxu0 0.0
      %308 = vmatprep.subr.mxu0 0.0
      %309 = vmatpush1.msra.mxu0 0.0
      %310 = vmatprep.subr.mxu0 0.0
      %311 = vmatpush1.msra.mxu0 0.0
      %312 = vmatprep.subr.mxu0 0.0
      %313 = vmatpush1.msra.mxu0 0.0
      %314 = vmatprep.subr.mxu0 0.0
      %315 = vmatpush1.msra.mxu0 0.0
      %316 = vmatprep.subr.mxu0 0.0
      %317 = vmatpush1.msra.mxu0 0.0
      %318 = vmatprep.subr.mxu0 0.0
      %319 = vmatpush1.msra.mxu0 0.0
      %320 = vmatprep.subr.mxu0 0.0
      %321 = vmatpush1.msra.mxu0 0.0
      %322 = vmatprep.subr.mxu0 0.0
      %323 = vmatpush1.msra.mxu0 0.0
      %324 = vmatprep.subr.mxu0 0.0
      %325 = vmatpush1.msra.mxu0 0.0
      %326 = vmatprep.subr.mxu0 0.0
      %327 = vmatpush1.msra.mxu0 0.0
      %328 = vmatprep.subr.mxu0 0.0
      %329 = vmatpush1.msra.mxu0 0.0
      %330 = vmatprep.subr.mxu0 0.0
      %331 = vmatpush1.msra.mxu0 0.0
      %332 = vmatprep.subr.mxu0 0.0
      %333 = vmatpush1.msra.mxu0 0.0
      %334 = vmatprep.subr.mxu0 0.0
      %335 = vmatpush1.msra.mxu0 0.0
      %336 = vmatprep.subr.mxu0 0.0
      %337 = vmatpush1.msra.mxu0 0.0
      %338 = vmatprep.subr.mxu0 0.0
      %339 = vmatpush1.msra.mxu0 0.0
      %340 = vmatprep.subr.mxu0 0.0
      %341 = vmatpush1.msra.mxu0 0.0
      %342 = vmatprep.subr.mxu0 0.0
      %343 = vmatpush1.msra.mxu0 0.0
      %344 = vmatprep.subr.mxu0 0.0
      %345 = vmatpush1.msra.mxu0 0.0
      %346 = vmatprep.subr.mxu0 0.0
      %347 = vmatpush1.msra.mxu0 0.0
      %348 = vmatprep.mubr.f32.mxu0 0.0
      %349 = vmatmul.mubr.f32.gmra.mrb[0].mxu0 %v275
      %v350 = vpop.f32.mrb[0].mxu0
      %v351 = vadd.f32 %v271, %v350
      %v352 = vpop.f32.mrb[0].mxu0
      %v353 = vadd.f32 %v271, %v352
      %354 = vdwg.mxu0
      %v355 = vmax.f32 %v351, 0.0
      %v356 = vmax.f32 %v353, 0.0
      %v357 = vld [vmem:[%s3] sm:$0xf]
      %359 = vset.pattern.permute.xlu0 0
      %360 = vperm.xlu0 %359, %v357
      %v361 = vpop.permute.xlu0 %360
      %v363 = vmul.f32 %v355, %v361
      %v364 = vmul.f32 %v356, %v361
      %v365 = vld [vmem:[%s4] sm:$0xf]
      %367 = vset.pattern.permute.xlu0 0
      %368 = vperm.xlu0 %367, %v365
      %v369 = vpop.permute.xlu0 %368
      %v371 = vadd.f32 %v363, %v369
      %v372 = vadd.f32 %v364, %v369
      %v375 = vcombine.low %v371, %v372
      %377 = vst [vmem:[%s262] sm:$0xff] %v375
      %s378 = smul.u32 2, %s21
      %p379 = scmp.lt.s32.totalorder %s20, 1
      %s380 = scalar_select %p379, %s20, 1
      %p381 = scmp.lt.s32.totalorder %s378, 1
      %s382 = scalar_select %p381, %s378, 1
      %s383 = smul.addr %s380, 2
      %s384 = sadd.s32 %s382, %s383
      %s385 = smul.addr %s384, 4
      %s386 = scalar_lea.vmem %s5, %s385
      // Predicated region
      $region41: #{unet_block_forward.7} parent=39 // pred_check
        %p387 = pneg %p160
      $region42: #{unet_block_forward.7} parent=39 // pred_check_branch
        %389 = sbr.rel (%p387) target = $region44
      $region43: #{unet_block_forward.7} parent=39 // pred_region
        %s390 = smul.u32 2, %s21
      $region44: #{unet_block_forward.7} parent=39 // pred_fallthru
        _
    $region40: #{unet_block_forward.7} parent=5 // pred_fallthru
      _
    %p391 = scmp.le.s32.totalorder 2, %s11
    // Predicated region
    $region45: #{unet_block_forward.7} parent=5 // pred_check
      %p392 = pneg %p391
    $region46: #{unet_block_forward.7} parent=5 // pred_check_branch
      %394 = sbr.rel (%p392) target = $region48
    $region47: #{unet_block_forward.7} parent=5 // pred_region
      %s395 = ssub.s32 %s11, 2
      // Predicated region
      $region49: #{unet_block_forward.7} parent=47 // pred_check
        %p396 = pneg %p166
      $region50: #{unet_block_forward.7} parent=47 // pred_check_branch
        %398 = sbr.rel (%p396) target = $region52
      $region51: #{unet_block_forward.7} parent=47 // pred_region
        %s399 = smul.u32 2, %s23
        %p400 = scmp.lt.s32.totalorder %s22, 1
        %s401 = scalar_select %p400, %s22, 1
        %p402 = scmp.lt.s32.totalorder %s399, 1
        %s403 = scalar_select %p402, %s399, 1
        %s404 = smul.addr %s401, 2
        %s405 = sadd.s32 %s403, %s404
        %s406 = smul.addr %s405, 4
        %s407 = scalar_lea.vmem %s5, %s406
      $region52: #{unet_block_forward.7} parent=47 // pred_fallthru
        _
    $region48: #{unet_block_forward.7} parent=5 // pred_fallthru
      _
  $region6: #{unet_block_forward.7} parent=0 // loop_footer
    %s15 = sadd.s32 1, %s11
  $region7: #{unet_block_forward.7} parent=0 // loop_footer_branch
    %10 = sbr.rel target = $region3
  $region8: #{unet_block_forward.7} parent=0 // loop_exit
    _

// kernel: unet_block_forward.5
$region0: #{unet_block_forward.5}
  #allocation0 [shape = 'u32[]', space=smem, size = 0x4, offset = 0x4, fixed_abs, tag = 'smem constant byte address 0x4 - core index']
  #allocation1 [shape = 'u32[144,128]{1,0:T(1,128)}', space=vmem, size = 0x12000, scoped, tag = 'internal scratch']
  %s0 = inlined_call_operand.vmem [shape: f32[2,4,64], index: 0, kind: input, shape index: {}]
  %s1 = inlined_call_operand.vmem [shape: f32[16,4], index: 1, kind: input, shape index: {}]
  %s2 = inlined_call_operand.vmem [shape: f32[16,1], index: 2, kind: input, shape index: {}]
  %s3 = inlined_call_operand.vmem [shape: f32[16,1], index: 3, kind: input, shape index: {}]
  %s4 = inlined_call_operand.vmem [shape: f32[16,1], index: 4, kind: input, shape index: {}]
  %s5 = inlined_call_operand.vmem [shape: f32[2,16,64], index: 5, kind: output, shape index: {}]
  %s6 = sld [smem:[#allocation0]]
  $region53: #{unet_block_forward.5} parent=0
    _
  %s8 = ssub.s32 1, %s6
  %s9 = scalar_select 0, %s8, %s6
  loop: start=0, step=1, limit=4
  $region2: #{unet_block_forward.5} parent=0 // loop_pre_header
    _
  $region3: #{unet_block_forward.5} parent=0 // loop_header
    %s11 = sphi 0, %s15
    %p12 = scmp.ge.s32.totalorder %s11, 4
    %s18 = sphi 0, %s30
    %s19 = sphi 0, %s26
    %s20 = sphi 0, %s18
    %s21 = sphi 0, %s19
    %s22 = sphi 0, %s20
    %s23 = sphi 0, %s21
    %s35 = sphi 0, %s37
    %s38 = sphi 0, %s35
    %s39 = sphi 0, %s38
    %s55 = sphi 0, %s39
    %s59 = sphi 0, %s59
    %s61 = sphi 0, %s59
    %s62 = sphi 0, %s61
    %s76 = sphi 0, %s62
    %s80 = sphi 0, %s80
    %s82 = sphi 0, %s80
    %s83 = sphi 0, %s82
    %s97 = sphi 0, %s83
    %s101 = sphi 0, %s101
    %s103 = sphi 0, %s101
    %s104 = sphi 0, %s103
    %s118 = sphi 0, %s104
    %s122 = sphi 0, %s122
    %s124 = sphi 0, %s122
    %s125 = sphi 0, %s124
    %s139 = sphi 0, %s125
    %s147 = sphi 0, %s149
    %s150 = sphi 0, %s147
    %s151 = sphi 0, %s150
    %s167 = sphi 0, %s151
  $region4: #{unet_block_forward.5} parent=0 // loop_header_branch
    %14 = sbr.rel (%p12) target = $region8
  $region5: #{unet_block_forward.5} parent=0 // loop_body
    %s16 = ssub.s32 %s11, 1
    %s17 = ssub.s32 %s11, 2
    %s24 = sadd.s32 1, %s19
    %p25 = scmp.ge.s32.totalorder %s24, 1
    %s26 = scalar_select %p25, 0, %s24
    %s27 = sadd.s32 1, %s18
    %s28 = scalar_select %p25, %s27, %s18
    %p29 = scmp.ge.s32.totalorder %s28, 2
    %s30 = scalar_select %p29, 0, %s28
    %s31 = ssub.s32 %s18, %s30
    %s32 = ssub.s32 %s19, %s26
    %s33 = sor.u32 %s31, %s32
    %p34 = scmp.eq.s32.totalorder %s33, 0
    %s36 = sadd.s32 %s35, 1
    %s37 = scalar_select %p34, %s35, %s36
    %p40 = pneg %p34
    %p41 = scmp.eq.s32.totalorder %s11, 1
    %p42 = por %p40, %p41
    %p43 = scmp.ne.s32.totalorder %s35, %s38
    %p44 = scmp.eq.s32.totalorder %s11, 0
    %p45 = por %p43, %p44
    %p46 = scmp.ne.s32.totalorder %s35, %s38
    %p47 = scmp.eq.s32.totalorder %s16, 1
    %p48 = por %p46, %p47
    %p49 = scmp.ne.s32.totalorder %s38, %s39
    %p50 = scmp.eq.s32.totalorder %s16, 0
    %p51 = por %p49, %p50
    %p52 = scmp.ne.s32.totalorder %s38, %s39
    %p53 = scmp.eq.s32.totalorder %s17, 1
    %p54 = por %p52, %p53
    %p56 = scmp.ne.s32.totalorder %s39, %s55
    %p57 = scmp.eq.s32.totalorder %s17, 0
    %p58 = por %p56, %p57
    %s60 = sadd.s32 %s59, 1
    %p63 = scmp.eq.s32.totalorder %s11, 1
    %p64 = scmp.ne.s32.totalorder %s59, %s61
    %p65 = scmp.eq.s32.totalorder %s11, 0
    %p66 = por %p64, %p65
    %p67 = scmp.ne.s32.totalorder %s59, %s61
    %p68 = scmp.eq.s32.totalorder %s16, 1
    %p69 = por %p67, %p68
    %p70 = scmp.ne.s32.totalorder %s61, %s62
    %p71 = scmp.eq.s32.totalorder %s16, 0
    %p72 = por %p70, %p71
    %p73 = scmp.ne.s32.totalorder %s61, %s62
    %p74 = scmp.eq.s32.totalorder %s17, 1
    %p75 = por %p73, %p74
    %p77 = scmp.ne.s32.totalorder %s62, %s76
    %p78 = scmp.eq.s32.totalorder %s17, 0
    %p79 = por %p77, %p78
    %s81 = sadd.s32 %s80, 1
    %p84 = scmp.eq.s32.totalorder %s11, 1
    %p85 = scmp.ne.s32.totalorder %s80, %s82
    %p86 = scmp.eq.s32.totalorder %s11, 0
    %p87 = por %p85, %p86
    %p88 = scmp.ne.s32.totalorder %s80, %s82
    %p89 = scmp.eq.s32.totalorder %s16, 1
    %p90 = por %p88, %p89
    %p91 = scmp.ne.s32.totalorder %s82, %s83
    %p92 = scmp.eq.s32.totalorder %s16, 0
    %p93 = por %p91, %p92
    %p94 = scmp.ne.s32.totalorder %s82, %s83
    %p95 = scmp.eq.s32.totalorder %s17, 1
    %p96 = por %p94, %p95
    %p98 = scmp.ne.s32.totalorder %s83, %s97
    %p99 = scmp.eq.s32.totalorder %s17, 0
    %p100 = por %p98, %p99
    %s102 = sadd.s32 %s101, 1
    %p105 = scmp.eq.s32.totalorder %s11, 1
    %p106 = scmp.ne.s32.totalorder %s101, %s103
    %p107 = scmp.eq.s32.totalorder %s11, 0
    %p108 = por %p106, %p107
    %p109 = scmp.ne.s32.totalorder %s101, %s103
    %p110 = scmp.eq.s32.totalorder %s16, 1
    %p111 = por %p109, %p110
    %p112 = scmp.ne.s32.totalorder %s103, %s104
    %p113 = scmp.eq.s32.totalorder %s16, 0
    %p114 = por %p112, %p113
    %p115 = scmp.ne.s32.totalorder %s103, %s104
    %p116 = scmp.eq.s32.totalorder %s17, 1
    %p117 = por %p115, %p116
    %p119 = scmp.ne.s32.totalorder %s104, %s118
    %p120 = scmp.eq.s32.totalorder %s17, 0
    %p121 = por %p119, %p120
    %s123 = sadd.s32 %s122, 1
    %p126 = scmp.eq.s32.totalorder %s11, 1
    %p127 = scmp.ne.s32.totalorder %s122, %s124
    %p128 = scmp.eq.s32.totalorder %s11, 0
    %p129 = por %p127, %p128
    %p130 = scmp.ne.s32.totalorder %s122, %s124
    %p131 = scmp.eq.s32.totalorder %s16, 1
    %p132 = por %p130, %p131
    %p133 = scmp.ne.s32.totalorder %s124, %s125
    %p134 = scmp.eq.s32.totalorder %s16, 0
    %p135 = por %p133, %p134
    %p136 = scmp.ne.s32.totalorder %s124, %s125
    %p137 = scmp.eq.s32.totalorder %s17, 1
    %p138 = por %p136, %p137
    %p140 = scmp.ne.s32.totalorder %s125, %s139
    %p141 = scmp.eq.s32.totalorder %s17, 0
    %p142 = por %p140, %p141
    %s143 = ssub.s32 %s18, %s30
    %s144 = ssub.s32 %s19, %s26
    %s145 = sor.u32 %s143, %s144
    %p146 = scmp.eq.s32.totalorder %s145, 0
    %s148 = sadd.s32 %s147, 1
    %s149 = scalar_select %p146, %s147, %s148
    %p152 = pneg %p146
    %p153 = scmp.eq.s32.totalorder %s11, 1
    %p154 = por %p152, %p153
    %p155 = scmp.ne.s32.totalorder %s147, %s150
    %p156 = scmp.eq.s32.totalorder %s11, 0
    %p157 = por %p155, %p156
    %p158 = scmp.ne.s32.totalorder %s147, %s150
    %p159 = scmp.eq.s32.totalorder %s16, 1
    %p160 = por %p158, %p159
    %p161 = scmp.ne.s32.totalorder %s150, %s151
    %p162 = scmp.eq.s32.totalorder %s16, 0
    %p163 = por %p161, %p162
    %p164 = scmp.ne.s32.totalorder %s150, %s151
    %p165 = scmp.eq.s32.totalorder %s17, 1
    %p166 = por %p164, %p165
    %p168 = scmp.ne.s32.totalorder %s151, %s167
    %p169 = scmp.eq.s32.totalorder %s17, 0
    %p170 = por %p168, %p169
    %p171 = scmp.le.s32.totalorder 1, %s11
    %p172 = scmp.lt.s32.totalorder %s11, 3
    %p173 = pnand %p171, %p172
    %p174 = pneg %p173
    // Predicated region
    $region9: #{unet_block_forward.5} parent=5 // pred_check
      _
    $region10: #{unet_block_forward.5} parent=5 // pred_check_branch
      %176 = sbr.rel (%p173) target = $region12
    $region11: #{unet_block_forward.5} parent=5 // pred_region
      %s177 = ssub.s32 %s11, 1
      // Predicated region
      $region13: #{unet_block_forward.5} parent=11 // pred_check
        %p178 = pneg %p72
      $region14: #{unet_block_forward.5} parent=11 // pred_check_branch
        %180 = sbr.rel (%p178) target = $region16
      $region15: #{unet_block_forward.5} parent=11 // pred_region
        _
      $region16: #{unet_block_forward.5} parent=11 // pred_fallthru
        _
      // Predicated region
      $region17: #{unet_block_forward.5} parent=11 // pred_check
        %p181 = pneg %p93
      $region18: #{unet_block_forward.5} parent=11 // pred_check_branch
        %183 = sbr.rel (%p181) target = $region20
      $region19: #{unet_block_forward.5} parent=11 // pred_region
        _
      $region20: #{unet_block_forward.5} parent=11 // pred_fallthru
        _
      // Predicated region
      $region21: #{unet_block_forward.5} parent=11 // pred_check
        %p184 = pneg %p114
      $region22: #{unet_block_forward.5} parent=11 // pred_check_branch
        %186 = sbr.rel (%p184) target = $region24
      $region23: #{unet_block_forward.5} parent=11 // pred_region
        _
      $region24: #{unet_block_forward.5} parent=11 // pred_fallthru
        _
      // Predicated region
      $region25: #{unet_block_forward.5} parent=11 // pred_check
        %p187 = pneg %p135
      $region26: #{unet_block_forward.5} parent=11 // pred_check_branch
        %189 = sbr.rel (%p187) target = $region28
      $region27: #{unet_block_forward.5} parent=11 // pred_region
        _
      $region28: #{unet_block_forward.5} parent=11 // pred_fallthru
        _
    $region12: #{unet_block_forward.5} parent=5 // pred_fallthru
      _
    %p190 = scmp.lt.s32.totalorder %s11, 2
    // Predicated region
    $region29: #{unet_block_forward.5} parent=5 // pred_check
      %p191 = pneg %p190
    $region30: #{unet_block_forward.5} parent=5 // pred_check_branch
      %193 = sbr.rel (%p191) target = $region32
    $region31: #{unet_block_forward.5} parent=5 // pred_region
      // Predicated region
      $region33: #{unet_block_forward.5} parent=31 // pred_check
        %p194 = pneg %p45
      $region34: #{unet_block_forward.5} parent=31 // pred_check_branch
        %196 = sbr.rel (%p194) target = $region36
      $region35: #{unet_block_forward.5} parent=31 // pred_region
        %p197 = scmp.lt.s32.totalorder %s18, 1
        %s198 = scalar_select %p197, %s18, 1
        %p199 = scmp.lt.s32.totalorder %s19, 0
        %s200 = scalar_select %p199, %s19, 0
        %s201 = sadd.s32 %s200, %s198
        %s202 = smul.addr %s201, 4
        %s203 = scalar_lea.vmem %s0, %s202
      $region36: #{unet_block_forward.5} parent=31 // pred_fallthru
        _
    $region32: #{unet_block_forward.5} parent=5 // pred_fallthru
      _
    %p204 = scmp.le.s32.totalorder 1, %s11
    %p205 = scmp.lt.s32.totalorder %s11, 3
    %p206 = pnand %p204, %p205
    %p207 = pneg %p206
    // Predicated region
    $region37: #{unet_block_forward.5} parent=5 // pred_check
      _
    $region38: #{unet_block_forward.5} parent=5 // pred_check_branch
      %209 = sbr.rel (%p206) target = $region40
    $region39: #{unet_block_forward.5} parent=5 // pred_region
      %s210 = ssub.s32 %s11, 1
      %p211 = scmp.lt.s32.totalorder %s20, 1
      %s212 = scalar_select %p211, %s20, 1
      %p213 = scmp.lt.s32.totalorder %s21, 0
      %s214 = scalar_select %p213, %s21, 0
      %s215 = sadd.s32 %s214, %s212
      %s216 = smul.addr %s215, 4
      %s217 = scalar_lea.vmem %s0, %s216
      %p218 = pneg %p51
      %p219 = pneg %p48
      %p220 = pneg %p72
      %p221 = pneg %p69
      %p222 = pneg %p93
      %p223 = pneg %p90
      %p224 = pneg %p114
      %p225 = pneg %p111
      %p226 = pneg %p135
      %p227 = pneg %p132
      %p228 = pneg %p163
      %p229 = pneg %p160
      %p230 = scmp.lt.s32.totalorder %s20, 1
      %s231 = scalar_select %p230, %s20, 1
      %p232 = scmp.lt.s32.totalorder %s21, 0
      %s233 = scalar_select %p232, %s21, 0
      %s234 = smul.addr %s231, 2
      %s235 = sadd.s32 %s233, %s234
      %s236 = smul.addr %s235, 8
      %s237 = scalar_lea.vmem %s5, %s236
      %p238 = scmp.lt.s32.totalorder %s20, 1
      %s239 = scalar_select %p238, %s20, 1
      %p240 = scmp.lt.s32.totalorder %s21, 0
      %s241 = scalar_select %p240, %s21, 0
      %s242 = sadd.s32 %s241, %s239
      %s243 = smul.addr %s242, 4
      %s244 = scalar_lea.vmem %s0, %s243
      %p245 = scmp.lt.s32.totalorder %s20, 1
      %s246 = scalar_select %p245, %s20, 1
      %p247 = scmp.lt.s32.totalorder %s21, 0
      %s248 = scalar_select %p247, %s21, 0
      %s249 = smul.addr %s246, 2
      %s250 = sadd.s32 %s248, %s249
      %s251 = smul.addr %s250, 8
      %s252 = scalar_lea.vmem %s5, %s251
      %v253 = vld [vmem:[%s1] sm:$0xff]
      %v254 = vld [vmem:[%s1 + $0x8] sm:$0xff]
      %v255 = vld [vmem:[%s244] sm:$0xf]
      %v256 = vld [vmem:[%s2] sm:$0xff]
      %v257 = vld [vmem:[%s2 + $0x8] sm:$0xff]
      %259 = vset.pattern.permute.xlu0 0
      %260 = vperm.xlu0 %259, %v256
      %v261 = vpop.permute.xlu0 %260
      %264 = vset.pattern.permute.xlu0 0
      %265 = vperm.xlu0 %264, %v257
      %v266 = vpop.permute.xlu0 %265
      %vm268 = vcmask 31744
      %v270 = vsel %vm268, %v253, 0
      %v273 = vsel %vm268, %v254, 0
      %vm275 = vcmask 1043456
      %v277 = vsel %vm275, %v255, 0
      %279 = vmatprep.subr.mxu0 0.0
      %280 = vmatpush1.msra.mxu0 %v277
      %281 = vmatprep.subr.mxu0 0.0
      %282 = vmatpush1.msra.mxu0 0.0
      %283 = vmatprep.subr.mxu0 0.0
      %284 = vmatpush1.msra.mxu0 0.0
      %285 = vmatprep.subr.mxu0 0.0
      %286 = vmatpush1.msra.mxu0 0.0
      %287 = vmatprep.subr.mxu0 0.0
      %288 = vmatpush1.msra.mxu0 0.0
      %289 = vmatprep.subr.mxu0 0.0
      %290 = vmatpush1.msra.mxu0 0.0
      %291 = vmatprep.subr.mxu0 0.0
      %292 = vmatpush1.msra.mxu0 0.0
      %293 = vmatprep.subr.mxu0 0.0
      %294 = vmatpush1.msra.mxu0 0.0
      %295 = vmatprep.subr.mxu0 0.0
      %296 = vmatpush1.msra.mxu0 0.0
      %297 = vmatprep.subr.mxu0 0.0
      %298 = vmatpush1.msra.mxu0 0.0
      %299 = vmatprep.subr.mxu0 0.0
      %300 = vmatpush1.msra.mxu0 0.0
      %301 = vmatprep.subr.mxu0 0.0
      %302 = vmatpush1.msra.mxu0 0.0
      %303 = vmatprep.subr.mxu0 0.0
      %304 = vmatpush1.msra.mxu0 0.0
      %305 = vmatprep.subr.mxu0 0.0
      %306 = vmatpush1.msra.mxu0 0.0
      %307 = vmatprep.subr.mxu0 0.0
      %308 = vmatpush1.msra.mxu0 0.0
      %309 = vmatprep.subr.mxu0 0.0
      %310 = vmatpush1.msra.mxu0 0.0
      %311 = vmatprep.subr.mxu0 0.0
      %312 = vmatpush1.msra.mxu0 0.0
      %313 = vmatprep.subr.mxu0 0.0
      %314 = vmatpush1.msra.mxu0 0.0
      %315 = vmatprep.subr.mxu0 0.0
      %316 = vmatpush1.msra.mxu0 0.0
      %317 = vmatprep.subr.mxu0 0.0
      %318 = vmatpush1.msra.mxu0 0.0
      %319 = vmatprep.subr.mxu0 0.0
      %320 = vmatpush1.msra.mxu0 0.0
      %321 = vmatprep.subr.mxu0 0.0
      %322 = vmatpush1.msra.mxu0 0.0
      %323 = vmatprep.subr.mxu0 0.0
      %324 = vmatpush1.msra.mxu0 0.0
      %325 = vmatprep.subr.mxu0 0.0
      %326 = vmatpush1.msra.mxu0 0.0
      %327 = vmatprep.subr.mxu0 0.0
      %328 = vmatpush1.msra.mxu0 0.0
      %329 = vmatprep.subr.mxu0 0.0
      %330 = vmatpush1.msra.mxu0 0.0
      %331 = vmatprep.subr.mxu0 0.0
      %332 = vmatpush1.msra.mxu0 0.0
      %333 = vmatprep.subr.mxu0 0.0
      %334 = vmatpush1.msra.mxu0 0.0
      %335 = vmatprep.subr.mxu0 0.0
      %336 = vmatpush1.msra.mxu0 0.0
      %337 = vmatprep.subr.mxu0 0.0
      %338 = vmatpush1.msra.mxu0 0.0
      %339 = vmatprep.subr.mxu0 0.0
      %340 = vmatpush1.msra.mxu0 0.0
      %341 = vmatprep.subr.mxu0 0.0
      %342 = vmatpush1.msra.mxu0 0.0
      %343 = vmatprep.mubr.f32.mxu0 0.0
      %344 = vmatmul.mubr.f32.gmra.mrb[0].mxu0 %v270
      %v345 = vpop.f32.mrb[0].mxu0
      %v346 = vadd.f32 %v261, %v345
      %v347 = vpop.f32.mrb[0].mxu0
      %348 = vmatprep.mubr.f32.mxu0 0.0
      %349 = vmatmul.mubr.f32.gmra.mrb[0].mxu0 %v273
      %v350 = vpop.f32.mrb[0].mxu0
      %v351 = vadd.f32 %v266, %v350
      %v352 = vpop.f32.mrb[0].mxu0
      %353 = vdwg.mxu0
      %v354 = vmax.f32 %v346, 0.0
      %v355 = vmax.f32 %v351, 0.0
      %v356 = vld [vmem:[%s3] sm:$0xff]
      %v357 = vld [vmem:[%s3 + $0x8] sm:$0xff]
      %359 = vset.pattern.permute.xlu0 0
      %360 = vperm.xlu0 %359, %v356
      %v361 = vpop.permute.xlu0 %360
      %364 = vset.pattern.permute.xlu0 0
      %365 = vperm.xlu0 %364, %v357
      %v366 = vpop.permute.xlu0 %365
      %v368 = vmul.f32 %v354, %v361
      %v369 = vmul.f32 %v355, %v366
      %v370 = vld [vmem:[%s4] sm:$0xff]
      %v371 = vld [vmem:[%s4 + $0x8] sm:$0xff]
      %373 = vset.pattern.permute.xlu0 0
      %374 = vperm.xlu0 %373, %v370
      %v375 = vpop.permute.xlu0 %374
      %378 = vset.pattern.permute.xlu0 0
      %379 = vperm.xlu0 %378, %v371
      %v380 = vpop.permute.xlu0 %379
      %v382 = vadd.f32 %v368, %v375
      %v383 = vadd.f32 %v369, %v380
      %vm384 = vcmask 523264
      %385 = vst.msk [vmem:[%s252] sm:$0xff] %vm384, %v382
      %386 = vst.msk [vmem:[%s252 + $0x8] sm:$0xff] %vm384, %v383
      %p387 = scmp.lt.s32.totalorder %s20, 1
      %s388 = scalar_select %p387, %s20, 1
      %p389 = scmp.lt.s32.totalorder %s21, 0
      %s390 = scalar_select %p389, %s21, 0
      %s391 = smul.addr %s388, 2
      %s392 = sadd.s32 %s390, %s391
      %s393 = smul.addr %s392, 8
      %s394 = scalar_lea.vmem %s5, %s393
      // Predicated region
      $region41: #{unet_block_forward.5} parent=39 // pred_check
        %p395 = pneg %p160
      $region42: #{unet_block_forward.5} parent=39 // pred_check_branch
        %397 = sbr.rel (%p395) target = $region44
      $region43: #{unet_block_forward.5} parent=39 // pred_region
        _
      $region44: #{unet_block_forward.5} parent=39 // pred_fallthru
        _
    $region40: #{unet_block_forward.5} parent=5 // pred_fallthru
      _
    %p398 = scmp.le.s32.totalorder 2, %s11
    // Predicated region
    $region45: #{unet_block_forward.5} parent=5 // pred_check
      %p399 = pneg %p398
    $region46: #{unet_block_forward.5} parent=5 // pred_check_branch
      %401 = sbr.rel (%p399) target = $region48
    $region47: #{unet_block_forward.5} parent=5 // pred_region
      %s402 = ssub.s32 %s11, 2
      // Predicated region
      $region49: #{unet_block_forward.5} parent=47 // pred_check
        %p403 = pneg %p166
      $region50: #{unet_block_forward.5} parent=47 // pred_check_branch
        %405 = sbr.rel (%p403) target = $region52
      $region51: #{unet_block_forward.5} parent=47 // pred_region
        %p406 = scmp.lt.s32.totalorder %s22, 1
        %s407 = scalar_select %p406, %s22, 1
        %p408 = scmp.lt.s32.totalorder %s23, 0
        %s409 = scalar_select %p408, %s23, 0
        %s410 = smul.addr %s407, 2
        %s411 = sadd.s32 %s409, %s410
        %s412 = smul.addr %s411, 8
        %s413 = scalar_lea.vmem %s5, %s412
      $region52: #{unet_block_forward.5} parent=47 // pred_fallthru
        _
    $region48: #{unet_block_forward.5} parent=5 // pred_fallthru
      _
  $region6: #{unet_block_forward.5} parent=0 // loop_footer
    %s15 = sadd.s32 1, %s11
  $region7: #{unet_block_forward.5} parent=0 // loop_footer_branch
    %10 = sbr.rel target = $region3
  $region8: #{unet_block_forward.5} parent=0 // loop_exit
    _

</llo_original>
